<compile_context>
chip_gen: v7x
topology: tpu7x:2x2x1
jax: 0.10.0
libtpu: 0.0.40
codegen_flags: <defaults>
</compile_context>

<pallas_src>
import jax
import jax.numpy as jnp
import numpy as np
from jax.experimental import pallas as pl
from jax.experimental.pallas import tpu as pltpu


def _round_up(x, m):
    return (x + m - 1) // m * m


def _make_fwrf_kernel(num_maps, shapes):
    """shapes: list of (S_k, C_k) per feature map."""

    def kernel(*refs):
        # refs = (f_0, rfT_0, wT_0, ..., f_{K-1}, rfT_{K-1}, wT_{K-1}, bias, out)
        o_ref = refs[-1]
        b_ref = refs[-2]
        B, TV = o_ref.shape
        acc = jnp.zeros((B, TV), jnp.float32)
        for k in range(num_maps):
            f_ref = refs[3 * k]          # (B, C*S)   full feature map (bf16), resident
            rfT_ref = refs[3 * k + 1]    # (S, TV)    rf^T for this voxel tile (f32)
            wT_ref = refs[3 * k + 2]     # (C, TV)    readout weights for this voxel tile (f32)
            S, C = shapes[k]

            # Stable, *unnormalized* softmax over the spatial axis (sublanes of rf^T).
            r = rfT_ref[...].astype(jnp.float32)
            e = jnp.exp(r - jnp.max(r, axis=0, keepdims=True))          # (S, TV), max = 1
            # Deferred normalization: one EUP reciprocal per tile instead of S*TV divides.
            inv = pl.reciprocal(jnp.sum(e, axis=0, keepdims=True), approx=True)  # (1, TV)

            # Fold pooling weights into the readout weights:
            #   Wk[c*S + s, v] = wT[c, v] * e[s, v]
            # (S % 8 == 0 here, so the reshape is layout-trivial.)
            Wk = (wT_ref[...][:, None, :] * e[None, :, :]).reshape(C * S, TV)
            Wk = Wk.astype(f_ref.dtype)

            # One lane-filling MXU matmul per map: contraction dim = C*S, N = TV.
            h = jnp.dot(f_ref[...], Wk, preferred_element_type=jnp.float32)  # (B, TV)
            acc = acc + h * inv

        o_ref[...] = (acc + b_ref[...]).astype(o_ref.dtype)   # lane-dense (B, TV) store
    return kernel


def _estimate_vmem_bytes(B, shapes, tv, f_itemsize):
    total = 0
    for S, C in shapes:
        cs = C * S
        total += 2 * B * cs * f_itemsize        # feature map (<= 2 pipeline buffers)
        total += 2 * (S + C) * tv * 4           # double-buffered rf^T / w^T tiles
        total += cs * tv * (4 + f_itemsize)     # folded-weight temp (f32 build + cast)
        total += S * tv * 4                     # exp temp
    total += 2 * (1 + 2 * B) * tv * 4           # bias / out double buffers + accumulator
    return total


def layerwise_fwrf_forward(fmaps, params, *, pre_nl=None, post_nl=None, tv=256,
                           compute_dtype=jnp.bfloat16):
    """fmaps: list of (B, C_k, R_k, R_k). params: {'rfs': [(nv,R_k,R_k)], 'w': (nv,nf), 'b': (nv,)}.
    Returns (B, nv) — same as Torch_LayerwiseFWRF.forward.
    NOTE: summation order differs from the torch op (readout folded before pooling) and the
    MXU runs bf16 inputs with f32 accumulation — numerically close but not bit-identical."""
    assert post_nl is None  # TODO(synk): post_nl unsupported (would require materializing Phi)
    rfs, w, bias = params["rfs"], params["w"], params["b"]
    nv = w.shape[0]
    B = fmaps[0].shape[0]
    out_dtype = fmaps[0].dtype

    # Voxel tiling on the lane axis: tv a multiple of 128; pad nv up to a multiple of tv.
    tv = max(128, min(tv, _round_up(nv, 128)))
    nv_pad = _round_up(nv, tv)
    if nv_pad != nv:
        pad = nv_pad - nv
        w = jnp.pad(w, ((0, pad), (0, 0)))
        bias = jnp.pad(bias, (0, pad))
        rfs = [jnp.pad(rf, ((0, pad), (0, 0), (0, 0))) for rf in rfs]

    inputs, shapes = [], []
    off = 0
    for fm, rf in zip(fmaps, rfs):
        C, S = fm.shape[1], fm.shape[2] * fm.shape[3]
        f = fm.reshape(B, C, S)
        if pre_nl is not None:                       # applied to flattened features, as in torch
            f = pre_nl(f)
        # Natural contiguous flatten to (B, C*S): no transpose, no HBM relayout pass.
        f_flat = f.reshape(B, C * S).astype(compute_dtype)
        rfT = jnp.transpose(rf.reshape(nv_pad, S)).astype(jnp.float32)   # (S, nv)
        wT = jnp.transpose(w[:, off:off + C]).astype(jnp.float32)        # (C, nv)
        off += C
        inputs += [f_flat, rfT, wT]
        shapes.append((S, C))
    inputs.append(bias.reshape(1, nv_pad).astype(jnp.float32))

    grid = (nv_pad // tv,)
    est = _estimate_vmem_bytes(B, shapes, tv, jnp.dtype(compute_dtype).itemsize)
    vmem_limit = int(min(max(2 * est, 32 << 20), 64 << 20))   # budget against v7x's 64 MiB

    def build(single_buffer_fmaps):
        in_specs = []
        for S, C in shapes:
            if single_buffer_fmaps:
                # Constant index_map -> block never changes; a second pipeline buffer
                # would be pure VMEM waste for the largest inputs.
                f_spec = pl.BlockSpec((B, C * S), lambda i: (0, 0),
                                      pipeline_mode=pl.Buffered(1))
            else:
                f_spec = pl.BlockSpec((B, C * S), lambda i: (0, 0))
            in_specs += [
                f_spec,
                pl.BlockSpec((S, tv), lambda i: (0, i)),   # per-voxel-tile rf^T slice
                pl.BlockSpec((C, tv), lambda i: (0, i)),   # per-voxel-tile w^T slice
            ]
        in_specs.append(pl.BlockSpec((1, tv), lambda i: (0, i)))
        return pl.pallas_call(
            _make_fwrf_kernel(len(shapes), shapes),
            out_shape=jax.ShapeDtypeStruct((B, nv_pad), out_dtype),
            grid_spec=pltpu.PrefetchScalarGridSpec(
                num_scalar_prefetch=0,
                grid=grid,                               # voxel tiles; fully parallel
                in_specs=in_specs,
                out_specs=pl.BlockSpec((B, tv), lambda i: (0, i)),
            ),
            compiler_params=pltpu.CompilerParams(
                dimension_semantics=("parallel",),
                vmem_limit_bytes=vmem_limit),
        )

    try:
        out = build(True)(*inputs)
    except Exception:
        # Fallback if single-buffer pipeline_mode is not supported by this jax version.
        out = build(False)(*inputs)

    return out[:, :nv]


def layerwise_fwrf_reference(fmaps, params):
    """Pure-JAX f32 reference following the torch op order exactly."""
    rfs, w, b = params["rfs"], params["w"], params["b"]
    nv = w.shape[0]
    hp = jax.lax.Precision.HIGHEST
    phi = []
    for fm, rf in zip(fmaps, rfs):
        B, C = fm.shape[0], fm.shape[1]
        S = fm.shape[2] * fm.shape[3]
        g = jax.nn.softmax(rf.reshape(nv, S), axis=1)               # (nv, S)
        f = fm.reshape(B, C, S)                                     # (B, C, S)
        phi.append(jnp.einsum("vs,bcs->vbc", g, f, precision=hp))   # (nv, B, C)
    Phi = jnp.concatenate(phi, axis=2)                              # (nv, B, nf)
    return jnp.einsum("vbf,vf->bv", Phi, w, precision=hp) + b[None, :]


if __name__ == "__main__":
    key = jax.random.PRNGKey(0)
    k1, k2, k3, k4, k5, k6 = jax.random.split(key, 6)

    B = 2
    nv = 1024                      # four voxel tiles of 256 -> 4 parallel grid steps
    fmaps = [
        jax.random.normal(k1, (B, 8, 8, 8), jnp.float32),    # C0=8,  R0=8  (S0=64)
        jax.random.normal(k2, (B, 16, 4, 4), jnp.float32),   # C1=16, R1=4  (S1=16)
    ]
    nf = 8 + 16
    params = {
        # torch initializes rf to ones (uniform softmax); use random values here so the
        # softmax pooling path is exercised non-trivially.
        "rfs": [0.5 * jax.random.normal(k3, (nv, 8, 8), jnp.float32),
                0.5 * jax.random.normal(k4, (nv, 4, 4), jnp.float32)],
        "w": 0.01 * jax.random.normal(k5, (nv, nf), jnp.float32),
        "b": 0.01 * jax.random.normal(k6, (nv,), jnp.float32),
    }

    out = jax.block_until_ready(layerwise_fwrf_forward(fmaps, params))
    ref = jax.block_until_ready(layerwise_fwrf_reference(fmaps, params))

    assert out.shape == (B, nv), out.shape
    # Kernel runs bf16 feature maps on the MXU (f32 accumulation) + approx reciprocal,
    # so compare with bf16-appropriate tolerances against the f32/HIGHEST reference.
    np.testing.assert_allclose(np.asarray(out), np.asarray(ref), rtol=2e-2, atol=2e-3)

    print("KERNEL_OK")
</pallas_src>

<mosaic_0001>
module attributes {stable_mosaic.version = 11 : i64} {
  func.func @kernel(%arg0: i32, %arg1: memref<2x512xbf16, #tpu.memory_space<vmem>>, %arg2: memref<64x256xf32, #tpu.memory_space<vmem>>, %arg3: memref<8x256xf32, #tpu.memory_space<vmem>>, %arg4: memref<2x256xbf16, #tpu.memory_space<vmem>>, %arg5: memref<16x256xf32, #tpu.memory_space<vmem>>, %arg6: memref<16x256xf32, #tpu.memory_space<vmem>>, %arg7: memref<1x256xf32, #tpu.memory_space<vmem>>, %arg8: memref<2x256xf32, #tpu.memory_space<vmem>>) attributes {dimension_semantics = [#tpu.dimension_semantics<parallel>], iteration_bounds = array<i64: 4>, scalar_prefetch = 0 : i64, scratch_operands = 0 : i64, tpu.core_type = #tpu.core_type<tc>, window_params = [{pipeline_mode = #tpu.pipeline_mode<synchronous>, transform_indices = @transform_0, window_bounds = array<i64: 2, 512>}, {transform_indices = @transform_1, window_bounds = array<i64: 64, 256>}, {transform_indices = @transform_2, window_bounds = array<i64: 8, 256>}, {pipeline_mode = #tpu.pipeline_mode<synchronous>, transform_indices = @transform_3, window_bounds = array<i64: 2, 256>}, {transform_indices = @transform_4, window_bounds = array<i64: 16, 256>}, {transform_indices = @transform_5, window_bounds = array<i64: 16, 256>}, {transform_indices = @transform_6, window_bounds = array<i64: 1, 256>}, {transform_indices = @transform_7, window_bounds = array<i64: 2, 256>}]} {
    %cst = arith.constant 0.000000e+00 : f32
    %0 = vector.broadcast %cst : f32 to vector<2x256xf32>
    %c0 = arith.constant 0 : index
    %c0_0 = arith.constant 0 : index
    %1 = vector.load %arg2[%c0, %c0_0] : memref<64x256xf32, #tpu.memory_space<vmem>>, vector<64x256xf32>
    %cst_1 = arith.constant dense<0xFF800000> : vector<256xf32>
    %2 = vector.multi_reduction <maximumf>, %1, %cst_1 [0] : vector<64x256xf32> to vector<256xf32>
    %3 = vector.shape_cast %2 : vector<256xf32> to vector<1x256xf32>
    %4 = vector.broadcast %3 : vector<1x256xf32> to vector<64x256xf32>
    %5 = arith.subf %1, %4 : vector<64x256xf32>
    %6 = math.exp %5 : vector<64x256xf32>
    %cst_2 = arith.constant dense<0.000000e+00> : vector<256xf32>
    %7 = vector.multi_reduction <add>, %6, %cst_2 [0] : vector<64x256xf32> to vector<256xf32>
    %8 = vector.shape_cast %7 : vector<256xf32> to vector<1x256xf32>
    %9 = tpu.reciprocal %8 {approx = true} : vector<1x256xf32> -> vector<1x256xf32>
    %c0_3 = arith.constant 0 : index
    %c0_4 = arith.constant 0 : index
    %10 = vector.load %arg3[%c0_3, %c0_4] : memref<8x256xf32, #tpu.memory_space<vmem>>, vector<8x256xf32>
    %11 = vector.shape_cast %10 : vector<8x256xf32> to vector<8x1x256xf32>
    %12 = vector.shape_cast %6 : vector<64x256xf32> to vector<1x64x256xf32>
    %13 = vector.broadcast %11 : vector<8x1x256xf32> to vector<8x64x256xf32>
    %14 = vector.broadcast %12 : vector<1x64x256xf32> to vector<8x64x256xf32>
    %15 = arith.mulf %13, %14 : vector<8x64x256xf32>
    %16 = vector.shape_cast %15 : vector<8x64x256xf32> to vector<512x256xf32>
    %17 = arith.truncf %16 : vector<512x256xf32> to vector<512x256xbf16>
    %c0_5 = arith.constant 0 : index
    %c0_6 = arith.constant 0 : index
    %18 = vector.load %arg1[%c0_5, %c0_6] : memref<2x512xbf16, #tpu.memory_space<vmem>>, vector<2x512xbf16>
    %cst_7 = arith.constant dense<0.000000e+00> : vector<2x256xf32>
    %19 = tpu.matmul %18, %17, %cst_7 {dimension_numbers = #tpu.dot_dimension_numbers<[1], [0], [0], [1], [0, 0, 1, 1], [], []>} : vector<2x512xbf16>, vector<512x256xbf16>, vector<2x256xf32> -> vector<2x256xf32>
    %20 = vector.broadcast %9 : vector<1x256xf32> to vector<2x256xf32>
    %21 = arith.mulf %19, %20 : vector<2x256xf32>
    %22 = arith.addf %0, %21 : vector<2x256xf32>
    %c0_8 = arith.constant 0 : index
    %c0_9 = arith.constant 0 : index
    %23 = vector.load %arg5[%c0_8, %c0_9] : memref<16x256xf32, #tpu.memory_space<vmem>>, vector<16x256xf32>
    %cst_10 = arith.constant dense<0xFF800000> : vector<256xf32>
    %24 = vector.multi_reduction <maximumf>, %23, %cst_10 [0] : vector<16x256xf32> to vector<256xf32>
    %25 = vector.shape_cast %24 : vector<256xf32> to vector<1x256xf32>
    %26 = vector.broadcast %25 : vector<1x256xf32> to vector<16x256xf32>
    %27 = arith.subf %23, %26 : vector<16x256xf32>
    %28 = math.exp %27 : vector<16x256xf32>
    %cst_11 = arith.constant dense<0.000000e+00> : vector<256xf32>
    %29 = vector.multi_reduction <add>, %28, %cst_11 [0] : vector<16x256xf32> to vector<256xf32>
    %30 = vector.shape_cast %29 : vector<256xf32> to vector<1x256xf32>
    %31 = tpu.reciprocal %30 {approx = true} : vector<1x256xf32> -> vector<1x256xf32>
    %c0_12 = arith.constant 0 : index
    %c0_13 = arith.constant 0 : index
    %32 = vector.load %arg6[%c0_12, %c0_13] : memref<16x256xf32, #tpu.memory_space<vmem>>, vector<16x256xf32>
    %33 = vector.shape_cast %32 : vector<16x256xf32> to vector<16x1x256xf32>
    %34 = vector.shape_cast %28 : vector<16x256xf32> to vector<1x16x256xf32>
    %35 = vector.broadcast %33 : vector<16x1x256xf32> to vector<16x16x256xf32>
    %36 = vector.broadcast %34 : vector<1x16x256xf32> to vector<16x16x256xf32>
    %37 = arith.mulf %35, %36 : vector<16x16x256xf32>
    %38 = vector.shape_cast %37 : vector<16x16x256xf32> to vector<256x256xf32>
    %39 = arith.truncf %38 : vector<256x256xf32> to vector<256x256xbf16>
    %c0_14 = arith.constant 0 : index
    %c0_15 = arith.constant 0 : index
    %40 = vector.load %arg4[%c0_14, %c0_15] : memref<2x256xbf16, #tpu.memory_space<vmem>>, vector<2x256xbf16>
    %cst_16 = arith.constant dense<0.000000e+00> : vector<2x256xf32>
    %41 = tpu.matmul %40, %39, %cst_16 {dimension_numbers = #tpu.dot_dimension_numbers<[1], [0], [0], [1], [0, 0, 1, 1], [], []>} : vector<2x256xbf16>, vector<256x256xbf16>, vector<2x256xf32> -> vector<2x256xf32>
    %42 = vector.broadcast %31 : vector<1x256xf32> to vector<2x256xf32>
    %43 = arith.mulf %41, %42 : vector<2x256xf32>
    %44 = arith.addf %22, %43 : vector<2x256xf32>
    %c0_17 = arith.constant 0 : index
    %c0_18 = arith.constant 0 : index
    %45 = vector.load %arg7[%c0_17, %c0_18] : memref<1x256xf32, #tpu.memory_space<vmem>>, vector<1x256xf32>
    %46 = vector.broadcast %45 : vector<1x256xf32> to vector<2x256xf32>
    %47 = arith.addf %44, %46 : vector<2x256xf32>
    %c0_19 = arith.constant 0 : index
    %c0_20 = arith.constant 0 : index
    %48 = vector.load %arg8[%c0_19, %c0_20] : memref<2x256xf32, #tpu.memory_space<vmem>>, vector<2x256xf32>
    tpu.vector_store %arg8[%c0_19, %c0_20], %47 {strides = array<i32>} : memref<2x256xf32, #tpu.memory_space<vmem>>, vector<2x256xf32>,
    return
  }
  func.func @transform_0(%arg0: i32) -> (i32, i32) {
    %c0_i32 = arith.constant 0 : i32
    %c0_i32_0 = arith.constant 0 : i32
    %c0_i32_1 = arith.constant 0 : i32
    return %c0_i32, %c0_i32_0 : i32, i32
  }
  func.func @transform_1(%arg0: i32) -> (i32, i32) {
    %c0_i32 = arith.constant 0 : i32
    %c0_i32_0 = arith.constant 0 : i32
    return %c0_i32, %arg0 : i32, i32
  }
  func.func @transform_2(%arg0: i32) -> (i32, i32) {
    %c0_i32 = arith.constant 0 : i32
    %c0_i32_0 = arith.constant 0 : i32
    return %c0_i32, %arg0 : i32, i32
  }
  func.func @transform_3(%arg0: i32) -> (i32, i32) {
    %c0_i32 = arith.constant 0 : i32
    %c0_i32_0 = arith.constant 0 : i32
    %c0_i32_1 = arith.constant 0 : i32
    return %c0_i32, %c0_i32_0 : i32, i32
  }
  func.func @transform_4(%arg0: i32) -> (i32, i32) {
    %c0_i32 = arith.constant 0 : i32
    %c0_i32_0 = arith.constant 0 : i32
    return %c0_i32, %arg0 : i32, i32
  }
  func.func @transform_5(%arg0: i32) -> (i32, i32) {
    %c0_i32 = arith.constant 0 : i32
    %c0_i32_0 = arith.constant 0 : i32
    return %c0_i32, %arg0 : i32, i32
  }
  func.func @transform_6(%arg0: i32) -> (i32, i32) {
    %c0_i32 = arith.constant 0 : i32
    %c0_i32_0 = arith.constant 0 : i32
    return %c0_i32, %arg0 : i32, i32
  }
  func.func @transform_7(%arg0: i32) -> (i32, i32) {
    %c0_i32 = arith.constant 0 : i32
    %c0_i32_0 = arith.constant 0 : i32
    return %c0_i32, %arg0 : i32, i32
  }
}

module attributes {stable_mosaic.version = 11 : i64} {
  func.func @kernel(%arg0: i32, %arg1: memref<2x512xbf16, #tpu.memory_space<vmem>>, %arg2: memref<64x256xf32, #tpu.memory_space<vmem>>, %arg3: memref<8x256xf32, #tpu.memory_space<vmem>>, %arg4: memref<2x256xbf16, #tpu.memory_space<vmem>>, %arg5: memref<16x256xf32, #tpu.memory_space<vmem>>, %arg6: memref<16x256xf32, #tpu.memory_space<vmem>>, %arg7: memref<1x256xf32, #tpu.memory_space<vmem>>, %arg8: memref<2x256xf32, #tpu.memory_space<vmem>>) attributes {dimension_semantics = [#tpu.dimension_semantics<parallel>], iteration_bounds = array<i64: 4>, scalar_prefetch = 0 : i64, scratch_operands = 0 : i64, tpu.core_type = #tpu.core_type<tc>, window_params = [{pipeline_mode = #tpu.pipeline_mode<synchronous>, transform_indices = @transform_0, window_bounds = array<i64: 2, 512>}, {transform_indices = @transform_1, window_bounds = array<i64: 64, 256>}, {transform_indices = @transform_2, window_bounds = array<i64: 8, 256>}, {pipeline_mode = #tpu.pipeline_mode<synchronous>, transform_indices = @transform_3, window_bounds = array<i64: 2, 256>}, {transform_indices = @transform_4, window_bounds = array<i64: 16, 256>}, {transform_indices = @transform_5, window_bounds = array<i64: 16, 256>}, {transform_indices = @transform_6, window_bounds = array<i64: 1, 256>}, {transform_indices = @transform_7, window_bounds = array<i64: 2, 256>}]} {
    %cst = arith.constant 0.000000e+00 : f32
    %0 = vector.broadcast %cst : f32 to vector<2x256xf32>
    %c0 = arith.constant 0 : index
    %c0_0 = arith.constant 0 : index
    %1 = vector.load %arg2[%c0, %c0_0] : memref<64x256xf32, #tpu.memory_space<vmem>>, vector<64x256xf32>
    %cst_1 = arith.constant dense<0xFF800000> : vector<256xf32>
    %2 = vector.multi_reduction <maximumf>, %1, %cst_1 [0] : vector<64x256xf32> to vector<256xf32>
    %3 = vector.shape_cast %2 : vector<256xf32> to vector<1x256xf32>
    %4 = vector.broadcast %3 : vector<1x256xf32> to vector<64x256xf32>
    %5 = arith.subf %1, %4 : vector<64x256xf32>
    %6 = math.exp %5 : vector<64x256xf32>
    %cst_2 = arith.constant dense<0.000000e+00> : vector<256xf32>
    %7 = vector.multi_reduction <add>, %6, %cst_2 [0] : vector<64x256xf32> to vector<256xf32>
    %8 = vector.shape_cast %7 : vector<256xf32> to vector<1x256xf32>
    %9 = tpu.reciprocal %8 {approx = true} : vector<1x256xf32> -> vector<1x256xf32>
    %c0_3 = arith.constant 0 : index
    %c0_4 = arith.constant 0 : index
    %10 = vector.load %arg3[%c0_3, %c0_4] : memref<8x256xf32, #tpu.memory_space<vmem>>, vector<8x256xf32>
    %11 = vector.shape_cast %10 : vector<8x256xf32> to vector<8x1x256xf32>
    %12 = vector.shape_cast %6 : vector<64x256xf32> to vector<1x64x256xf32>
    %13 = vector.broadcast %11 : vector<8x1x256xf32> to vector<8x64x256xf32>
    %14 = vector.broadcast %12 : vector<1x64x256xf32> to vector<8x64x256xf32>
    %15 = arith.mulf %13, %14 : vector<8x64x256xf32>
    %16 = vector.shape_cast %15 : vector<8x64x256xf32> to vector<512x256xf32>
    %17 = arith.truncf %16 : vector<512x256xf32> to vector<512x256xbf16>
    %c0_5 = arith.constant 0 : index
    %c0_6 = arith.constant 0 : index
    %18 = vector.load %arg1[%c0_5, %c0_6] : memref<2x512xbf16, #tpu.memory_space<vmem>>, vector<2x512xbf16>
    %cst_7 = arith.constant dense<0.000000e+00> : vector<2x256xf32>
    %19 = tpu.matmul %18, %17, %cst_7 {dimension_numbers = #tpu.dot_dimension_numbers<[1], [0], [0], [1], [0, 0, 1, 1], [], []>} : vector<2x512xbf16>, vector<512x256xbf16>, vector<2x256xf32> -> vector<2x256xf32>
    %20 = vector.broadcast %9 : vector<1x256xf32> to vector<2x256xf32>
    %21 = arith.mulf %19, %20 : vector<2x256xf32>
    %22 = arith.addf %0, %21 : vector<2x256xf32>
    %c0_8 = arith.constant 0 : index
    %c0_9 = arith.constant 0 : index
    %23 = vector.load %arg5[%c0_8, %c0_9] : memref<16x256xf32, #tpu.memory_space<vmem>>, vector<16x256xf32>
    %cst_10 = arith.constant dense<0xFF800000> : vector<256xf32>
    %24 = vector.multi_reduction <maximumf>, %23, %cst_10 [0] : vector<16x256xf32> to vector<256xf32>
    %25 = vector.shape_cast %24 : vector<256xf32> to vector<1x256xf32>
    %26 = vector.broadcast %25 : vector<1x256xf32> to vector<16x256xf32>
    %27 = arith.subf %23, %26 : vector<16x256xf32>
    %28 = math.exp %27 : vector<16x256xf32>
    %cst_11 = arith.constant dense<0.000000e+00> : vector<256xf32>
    %29 = vector.multi_reduction <add>, %28, %cst_11 [0] : vector<16x256xf32> to vector<256xf32>
    %30 = vector.shape_cast %29 : vector<256xf32> to vector<1x256xf32>
    %31 = tpu.reciprocal %30 {approx = true} : vector<1x256xf32> -> vector<1x256xf32>
    %c0_12 = arith.constant 0 : index
    %c0_13 = arith.constant 0 : index
    %32 = vector.load %arg6[%c0_12, %c0_13] : memref<16x256xf32, #tpu.memory_space<vmem>>, vector<16x256xf32>
    %33 = vector.shape_cast %32 : vector<16x256xf32> to vector<16x1x256xf32>
    %34 = vector.shape_cast %28 : vector<16x256xf32> to vector<1x16x256xf32>
    %35 = vector.broadcast %33 : vector<16x1x256xf32> to vector<16x16x256xf32>
    %36 = vector.broadcast %34 : vector<1x16x256xf32> to vector<16x16x256xf32>
    %37 = arith.mulf %35, %36 : vector<16x16x256xf32>
    %38 = vector.shape_cast %37 : vector<16x16x256xf32> to vector<256x256xf32>
    %39 = arith.truncf %38 : vector<256x256xf32> to vector<256x256xbf16>
    %c0_14 = arith.constant 0 : index
    %c0_15 = arith.constant 0 : index
    %40 = vector.load %arg4[%c0_14, %c0_15] : memref<2x256xbf16, #tpu.memory_space<vmem>>, vector<2x256xbf16>
    %cst_16 = arith.constant dense<0.000000e+00> : vector<2x256xf32>
    %41 = tpu.matmul %40, %39, %cst_16 {dimension_numbers = #tpu.dot_dimension_numbers<[1], [0], [0], [1], [0, 0, 1, 1], [], []>} : vector<2x256xbf16>, vector<256x256xbf16>, vector<2x256xf32> -> vector<2x256xf32>
    %42 = vector.broadcast %31 : vector<1x256xf32> to vector<2x256xf32>
    %43 = arith.mulf %41, %42 : vector<2x256xf32>
    %44 = arith.addf %22, %43 : vector<2x256xf32>
    %c0_17 = arith.constant 0 : index
    %c0_18 = arith.constant 0 : index
    %45 = vector.load %arg7[%c0_17, %c0_18] : memref<1x256xf32, #tpu.memory_space<vmem>>, vector<1x256xf32>
    %46 = vector.broadcast %45 : vector<1x256xf32> to vector<2x256xf32>
    %47 = arith.addf %44, %46 : vector<2x256xf32>
    %c0_19 = arith.constant 0 : index
    %c0_20 = arith.constant 0 : index
    %48 = vector.load %arg8[%c0_19, %c0_20] : memref<2x256xf32, #tpu.memory_space<vmem>>, vector<2x256xf32>
    tpu.vector_store %arg8[%c0_19, %c0_20], %47 {strides = array<i32>} : memref<2x256xf32, #tpu.memory_space<vmem>>, vector<2x256xf32>,
    return
  }
  func.func @transform_0(%arg0: i32) -> (i32, i32) {
    %c0_i32 = arith.constant 0 : i32
    %c0_i32_0 = arith.constant 0 : i32
    %c0_i32_1 = arith.constant 0 : i32
    return %c0_i32, %c0_i32_0 : i32, i32
  }
  func.func @transform_1(%arg0: i32) -> (i32, i32) {
    %c0_i32 = arith.constant 0 : i32
    %c0_i32_0 = arith.constant 0 : i32
    return %c0_i32, %arg0 : i32, i32
  }
  func.func @transform_2(%arg0: i32) -> (i32, i32) {
    %c0_i32 = arith.constant 0 : i32
    %c0_i32_0 = arith.constant 0 : i32
    return %c0_i32, %arg0 : i32, i32
  }
  func.func @transform_3(%arg0: i32) -> (i32, i32) {
    %c0_i32 = arith.constant 0 : i32
    %c0_i32_0 = arith.constant 0 : i32
    %c0_i32_1 = arith.constant 0 : i32
    return %c0_i32, %c0_i32_0 : i32, i32
  }
  func.func @transform_4(%arg0: i32) -> (i32, i32) {
    %c0_i32 = arith.constant 0 : i32
    %c0_i32_0 = arith.constant 0 : i32
    return %c0_i32, %arg0 : i32, i32
  }
  func.func @transform_5(%arg0: i32) -> (i32, i32) {
    %c0_i32 = arith.constant 0 : i32
    %c0_i32_0 = arith.constant 0 : i32
    return %c0_i32, %arg0 : i32, i32
  }
  func.func @transform_6(%arg0: i32) -> (i32, i32) {
    %c0_i32 = arith.constant 0 : i32
    %c0_i32_0 = arith.constant 0 : i32
    return %c0_i32, %arg0 : i32, i32
  }
  func.func @transform_7(%arg0: i32) -> (i32, i32) {
    %c0_i32 = arith.constant 0 : i32
    %c0_i32_0 = arith.constant 0 : i32
    return %c0_i32, %arg0 : i32, i32
  }
}

</mosaic_0001>

<llo_original>
// kernel: tpu_custom_call.1
$region0: #{tpu_custom_call.1}
  #allocation0 [shape = 'u32[]', space=smem, size = 0x4, offset = 0x4, fixed_abs, tag = 'smem constant byte address 0x4 - core index']
  #allocation1 [shape = 'u32[144,128]{1,0:T(1,128)}', space=vmem, size = 0x12000, scoped, tag = 'internal scratch']
  %s0 = inlined_call_operand.hbm [shape: bf16[2,512], index: 0, kind: input, shape index: {}]
  %s1 = inlined_call_operand.hbm [shape: f32[64,1024], index: 1, kind: input, shape index: {}]
  %s2 = inlined_call_operand.hbm [shape: f32[8,1024], index: 2, kind: input, shape index: {}]
  %s3 = inlined_call_operand.vmem [shape: bf16[2,256], index: 3, kind: input, shape index: {}]
  %s4 = inlined_call_operand.hbm [shape: f32[16,1024], index: 4, kind: input, shape index: {}]
  %s5 = inlined_call_operand.hbm [shape: f32[16,1024], index: 5, kind: input, shape index: {}]
  %s6 = inlined_call_operand.vmem [shape: f32[1,1024], index: 6, kind: input, shape index: {}]
  %s7 = inlined_call_operand.hbm [shape: f32[2,1024], index: 7, kind: output, shape index: {}]
  %s8 = sld [smem:[#allocation0]]
  $region81: #{tpu_custom_call.1} parent=0
    _
  %s10 = ssub.s32 1, %s8
  %s11 = scalar_select 0, %s10, %s8
  $region1: #{tpu_custom_call.1} parent=0
    #allocation2 [shape = 'u8[2048]{0}', space=vmem, size = 0x800, scoped, tag = 'input window, operand 0, single buffered']
    #allocation3 [shape = 's32[2]{0}', space=sflag, size = 0x8, scoped, tag = 'scoped memory for tpu_custom_call.1']
    #allocation4 [shape = 's32[2]{0}', space=sflag, size = 0x8, scoped, tag = 'scoped memory for tpu_custom_call.1']
    #allocation5 [shape = 'u8[131072]{0}', space=vmem, size = 0x20000, scoped, tag = 'input window, operand 1']
    #allocation6 [shape = 's32[2]{0}', space=sflag, size = 0x8, scoped, tag = 'scoped memory for tpu_custom_call.1']
    #allocation7 [shape = 'u8[16384]{0}', space=vmem, size = 0x4000, scoped, tag = 'input window, operand 2']
    #allocation8 [shape = 'u8[32768]{0}', space=vmem, size = 0x8000, scoped, tag = 'input window, operand 4']
    #allocation9 [shape = 's32[2]{0}', space=sflag, size = 0x8, scoped, tag = 'scoped memory for tpu_custom_call.1']
    #allocation10 [shape = 'u8[32768]{0}', space=vmem, size = 0x8000, scoped, tag = 'input window, operand 5']
    #allocation11 [shape = 'u8[4096]{0}', space=vmem, size = 0x1000, scoped, tag = 'output window, operand 0']
    %12 = vsyncpa [#allocation3], 0
    %13 = vsyncpa [#allocation6], 0
    %s14 = scalar_lea.sflag [#allocation6], 1
    %15 = vsyncpa %s14, 0
    %16 = vsyncpa [#allocation9], 0
    %s17 = scalar_lea.sflag [#allocation9], 1
    %18 = vsyncpa %s17, 0
    %19 = vsyncpa [#allocation4], 0
    %s20 = scalar_lea.sflag [#allocation4], 1
    %21 = vsyncpa %s20, 0
    loop: start=0, step=1, limit=6
    $region2: #{tpu_custom_call.1} parent=1 // loop_pre_header
      _
    $region3: #{tpu_custom_call.1} parent=1 // loop_header
      %s23 = sphi 0, %s27
      %p24 = scmp.ge.s32.totalorder %s23, 6
      %s31 = sphi 0, %s31
      %s33 = sphi 0, %s31
      %s34 = sphi 0, %s33
      %s48 = sphi 0, %s34
      %s54 = sphi 0, %s56
      %s57 = sphi 0, %s54
      %s58 = sphi 0, %s57
      %s74 = sphi 0, %s58
      %s80 = sphi 0, %s82
      %s83 = sphi 0, %s80
      %s84 = sphi 0, %s83
      %s100 = sphi 0, %s84
      %s104 = sphi 0, %s104
      %s106 = sphi 0, %s104
      %s107 = sphi 0, %s106
      %s121 = sphi 0, %s107
      %s127 = sphi 0, %s129
      %s130 = sphi 0, %s127
      %s131 = sphi 0, %s130
      %s147 = sphi 0, %s131
      %s153 = sphi 0, %s155
      %s156 = sphi 0, %s153
      %s157 = sphi 0, %s156
      %s173 = sphi 0, %s157
      %s179 = sphi 0, %s181
      %s182 = sphi 0, %s179
      %s183 = sphi 0, %s182
      %s199 = sphi 0, %s183
      %s205 = sphi 0, %s207
      %s208 = sphi 0, %s205
      %s209 = sphi 0, %s208
      %s225 = sphi 0, %s209
    $region4: #{tpu_custom_call.1} parent=1 // loop_header_branch
      %26 = sbr.rel (%p24) target = $region8
    $region5: #{tpu_custom_call.1} parent=1 // loop_body
      %s28 = ssub.s32 %s23, 1
      %s29 = ssub.s32 %s23, 2
      %s30 = sadd.s32 %s23, 1
      %s32 = sadd.s32 %s31, 1
      %p35 = scmp.eq.s32.totalorder %s23, 3
      %p36 = scmp.ne.s32.totalorder %s31, %s33
      %p37 = scmp.eq.s32.totalorder %s23, 0
      %p38 = por %p36, %p37
      %p39 = scmp.ne.s32.totalorder %s31, %s33
      %p40 = scmp.eq.s32.totalorder %s28, 3
      %p41 = por %p39, %p40
      %p42 = scmp.ne.s32.totalorder %s33, %s34
      %p43 = scmp.eq.s32.totalorder %s28, 0
      %p44 = por %p42, %p43
      %p45 = scmp.ne.s32.totalorder %s33, %s34
      %p46 = scmp.eq.s32.totalorder %s29, 3
      %p47 = por %p45, %p46
      %p49 = scmp.ne.s32.totalorder %s34, %s48
      %p50 = scmp.eq.s32.totalorder %s29, 0
      %p51 = por %p49, %p50
      %s52 = ssub.s32 %s23, %s30
      %p53 = scmp.eq.s32.totalorder %s52, 0
      %s55 = sadd.s32 %s54, 1
      %s56 = scalar_select %p53, %s54, %s55
      %p59 = pneg %p53
      %p60 = scmp.eq.s32.totalorder %s23, 3
      %p61 = por %p59, %p60
      %p62 = scmp.ne.s32.totalorder %s54, %s57
      %p63 = scmp.eq.s32.totalorder %s23, 0
      %p64 = por %p62, %p63
      %p65 = scmp.ne.s32.totalorder %s54, %s57
      %p66 = scmp.eq.s32.totalorder %s28, 3
      %p67 = por %p65, %p66
      %p68 = scmp.ne.s32.totalorder %s57, %s58
      %p69 = scmp.eq.s32.totalorder %s28, 0
      %p70 = por %p68, %p69
      %p71 = scmp.ne.s32.totalorder %s57, %s58
      %p72 = scmp.eq.s32.totalorder %s29, 3
      %p73 = por %p71, %p72
      %p75 = scmp.ne.s32.totalorder %s58, %s74
      %p76 = scmp.eq.s32.totalorder %s29, 0
      %p77 = por %p75, %p76
      %s78 = ssub.s32 %s23, %s30
      %p79 = scmp.eq.s32.totalorder %s78, 0
      %s81 = sadd.s32 %s80, 1
      %s82 = scalar_select %p79, %s80, %s81
      %p85 = pneg %p79
      %p86 = scmp.eq.s32.totalorder %s23, 3
      %p87 = por %p85, %p86
      %p88 = scmp.ne.s32.totalorder %s80, %s83
      %p89 = scmp.eq.s32.totalorder %s23, 0
      %p90 = por %p88, %p89
      %p91 = scmp.ne.s32.totalorder %s80, %s83
      %p92 = scmp.eq.s32.totalorder %s28, 3
      %p93 = por %p91, %p92
      %p94 = scmp.ne.s32.totalorder %s83, %s84
      %p95 = scmp.eq.s32.totalorder %s28, 0
      %p96 = por %p94, %p95
      %p97 = scmp.ne.s32.totalorder %s83, %s84
      %p98 = scmp.eq.s32.totalorder %s29, 3
      %p99 = por %p97, %p98
      %p101 = scmp.ne.s32.totalorder %s84, %s100
      %p102 = scmp.eq.s32.totalorder %s29, 0
      %p103 = por %p101, %p102
      %s105 = sadd.s32 %s104, 1
      %p108 = scmp.eq.s32.totalorder %s23, 3
      %p109 = scmp.ne.s32.totalorder %s104, %s106
      %p110 = scmp.eq.s32.totalorder %s23, 0
      %p111 = por %p109, %p110
      %p112 = scmp.ne.s32.totalorder %s104, %s106
      %p113 = scmp.eq.s32.totalorder %s28, 3
      %p114 = por %p112, %p113
      %p115 = scmp.ne.s32.totalorder %s106, %s107
      %p116 = scmp.eq.s32.totalorder %s28, 0
      %p117 = por %p115, %p116
      %p118 = scmp.ne.s32.totalorder %s106, %s107
      %p119 = scmp.eq.s32.totalorder %s29, 3
      %p120 = por %p118, %p119
      %p122 = scmp.ne.s32.totalorder %s107, %s121
      %p123 = scmp.eq.s32.totalorder %s29, 0
      %p124 = por %p122, %p123
      %s125 = ssub.s32 %s23, %s30
      %p126 = scmp.eq.s32.totalorder %s125, 0
      %s128 = sadd.s32 %s127, 1
      %s129 = scalar_select %p126, %s127, %s128
      %p132 = pneg %p126
      %p133 = scmp.eq.s32.totalorder %s23, 3
      %p134 = por %p132, %p133
      %p135 = scmp.ne.s32.totalorder %s127, %s130
      %p136 = scmp.eq.s32.totalorder %s23, 0
      %p137 = por %p135, %p136
      %p138 = scmp.ne.s32.totalorder %s127, %s130
      %p139 = scmp.eq.s32.totalorder %s28, 3
      %p140 = por %p138, %p139
      %p141 = scmp.ne.s32.totalorder %s130, %s131
      %p142 = scmp.eq.s32.totalorder %s28, 0
      %p143 = por %p141, %p142
      %p144 = scmp.ne.s32.totalorder %s130, %s131
      %p145 = scmp.eq.s32.totalorder %s29, 3
      %p146 = por %p144, %p145
      %p148 = scmp.ne.s32.totalorder %s131, %s147
      %p149 = scmp.eq.s32.totalorder %s29, 0
      %p150 = por %p148, %p149
      %s151 = ssub.s32 %s23, %s30
      %p152 = scmp.eq.s32.totalorder %s151, 0
      %s154 = sadd.s32 %s153, 1
      %s155 = scalar_select %p152, %s153, %s154
      %p158 = pneg %p152
      %p159 = scmp.eq.s32.totalorder %s23, 3
      %p160 = por %p158, %p159
      %p161 = scmp.ne.s32.totalorder %s153, %s156
      %p162 = scmp.eq.s32.totalorder %s23, 0
      %p163 = por %p161, %p162
      %p164 = scmp.ne.s32.totalorder %s153, %s156
      %p165 = scmp.eq.s32.totalorder %s28, 3
      %p166 = por %p164, %p165
      %p167 = scmp.ne.s32.totalorder %s156, %s157
      %p168 = scmp.eq.s32.totalorder %s28, 0
      %p169 = por %p167, %p168
      %p170 = scmp.ne.s32.totalorder %s156, %s157
      %p171 = scmp.eq.s32.totalorder %s29, 3
      %p172 = por %p170, %p171
      %p174 = scmp.ne.s32.totalorder %s157, %s173
      %p175 = scmp.eq.s32.totalorder %s29, 0
      %p176 = por %p174, %p175
      %s177 = ssub.s32 %s23, %s30
      %p178 = scmp.eq.s32.totalorder %s177, 0
      %s180 = sadd.s32 %s179, 1
      %s181 = scalar_select %p178, %s179, %s180
      %p184 = pneg %p178
      %p185 = scmp.eq.s32.totalorder %s23, 3
      %p186 = por %p184, %p185
      %p187 = scmp.ne.s32.totalorder %s179, %s182
      %p188 = scmp.eq.s32.totalorder %s23, 0
      %p189 = por %p187, %p188
      %p190 = scmp.ne.s32.totalorder %s179, %s182
      %p191 = scmp.eq.s32.totalorder %s28, 3
      %p192 = por %p190, %p191
      %p193 = scmp.ne.s32.totalorder %s182, %s183
      %p194 = scmp.eq.s32.totalorder %s28, 0
      %p195 = por %p193, %p194
      %p196 = scmp.ne.s32.totalorder %s182, %s183
      %p197 = scmp.eq.s32.totalorder %s29, 3
      %p198 = por %p196, %p197
      %p200 = scmp.ne.s32.totalorder %s183, %s199
      %p201 = scmp.eq.s32.totalorder %s29, 0
      %p202 = por %p200, %p201
      %s203 = ssub.s32 %s23, %s30
      %p204 = scmp.eq.s32.totalorder %s203, 0
      %s206 = sadd.s32 %s205, 1
      %s207 = scalar_select %p204, %s205, %s206
      %p210 = pneg %p204
      %p211 = scmp.eq.s32.totalorder %s23, 3
      %p212 = por %p210, %p211
      %p213 = scmp.ne.s32.totalorder %s205, %s208
      %p214 = scmp.eq.s32.totalorder %s23, 0
      %p215 = por %p213, %p214
      %p216 = scmp.ne.s32.totalorder %s205, %s208
      %p217 = scmp.eq.s32.totalorder %s28, 3
      %p218 = por %p216, %p217
      %p219 = scmp.ne.s32.totalorder %s208, %s209
      %p220 = scmp.eq.s32.totalorder %s28, 0
      %p221 = por %p219, %p220
      %p222 = scmp.ne.s32.totalorder %s208, %s209
      %p223 = scmp.eq.s32.totalorder %s29, 3
      %p224 = por %p222, %p223
      %p226 = scmp.ne.s32.totalorder %s209, %s225
      %p227 = scmp.eq.s32.totalorder %s29, 0
      %p228 = por %p226, %p227
      %p229 = scmp.le.s32.totalorder 1, %s23
      %p230 = scmp.lt.s32.totalorder %s23, 5
      %p231 = pnand %p229, %p230
      %p232 = pneg %p231
      // Predicated region
      $region9: #{tpu_custom_call.1} parent=5 // pred_check
        _
      $region10: #{tpu_custom_call.1} parent=5 // pred_check_branch
        %234 = sbr.rel (%p231) target = $region12
      $region11: #{tpu_custom_call.1} parent=5 // pred_region
        %s235 = ssub.s32 %s23, 1
        // Predicated region
        $region13: #{tpu_custom_call.1} parent=11 // pred_check
          %p236 = pneg %p44
        $region14: #{tpu_custom_call.1} parent=11 // pred_check_branch
          %238 = sbr.rel (%p236) target = $region16
        $region15: #{tpu_custom_call.1} parent=11 // pred_region
          %s240 = ssub.s32 64, 64
          %241 = vsyncadd [#allocation3], %s240
          %s243 = sshll.u32 [#allocation2], 4
          %s244 = int_to_ptr.vmem [resolvable:$true] %s243
          %246 = dma.hbm_to_vmem [thread:$0]  %s0, 64, %s244, [#allocation3]
        $region16: #{tpu_custom_call.1} parent=11 // pred_fallthru
          _
        // Predicated region
        $region17: #{tpu_custom_call.1} parent=11 // pred_check
          %p247 = pneg %p117
        $region18: #{tpu_custom_call.1} parent=11 // pred_check_branch
          %249 = sbr.rel (%p247) target = $region20
        $region19: #{tpu_custom_call.1} parent=11 // pred_region
          _
        $region20: #{tpu_custom_call.1} parent=11 // pred_fallthru
          _
      $region12: #{tpu_custom_call.1} parent=5 // pred_fallthru
        _
      %p250 = scmp.lt.s32.totalorder %s23, 4
      // Predicated region
      $region21: #{tpu_custom_call.1} parent=5 // pred_check
        %p251 = pneg %p250
      $region22: #{tpu_custom_call.1} parent=5 // pred_check_branch
        %253 = sbr.rel (%p251) target = $region24
      $region23: #{tpu_custom_call.1} parent=5 // pred_region
        // Predicated region
        $region25: #{tpu_custom_call.1} parent=23 // pred_check
          %p254 = pneg %p64
        $region26: #{tpu_custom_call.1} parent=23 // pred_check_branch
          %256 = sbr.rel (%p254) target = $region28
        $region27: #{tpu_custom_call.1} parent=23 // pred_region
          %s257 = sand.u32 %s23, 1
          %s258 = scalar_lea.sflag [#allocation6], %s257
          %s259 = sand.u32 %s54, 1
          %s260 = smul.addr %s259, 128
          %s261 = scalar_lea.vmem [#allocation5], %s260
          %s262 = smul.u32 2, %s23
          %s264 = ssub.s32 2048, 2048
          %265 = vsyncadd %s258, %s264
          %s266 = smul.addr %s262, 128
          %s267 = scalar_lea.hbm %s1, %s266
          %s268 = sshll.u32 %s261, 4
          %s269 = int_to_ptr.vmem [resolvable:$true] %s268
          %274 = dma.hbm_to_vmem [thread:$0]  %s267, 2048, %s269, %s258, 1024, 256, 16
        $region28: #{tpu_custom_call.1} parent=23 // pred_fallthru
          _
        // Predicated region
        $region29: #{tpu_custom_call.1} parent=23 // pred_check
          %p275 = pneg %p90
        $region30: #{tpu_custom_call.1} parent=23 // pred_check_branch
          %277 = sbr.rel (%p275) target = $region32
        $region31: #{tpu_custom_call.1} parent=23 // pred_region
          %s278 = sand.u32 %s23, 1
          %s279 = scalar_lea.sflag [#allocation6], %s278
          %s280 = sand.u32 %s80, 1
          %s281 = smul.addr %s280, 16
          %s282 = scalar_lea.vmem [#allocation7], %s281
          %s283 = smul.u32 2, %s23
          %s285 = ssub.s32 256, 256
          %286 = vsyncadd %s279, %s285
          %s287 = smul.addr %s283, 128
          %s288 = scalar_lea.hbm %s2, %s287
          %s290 = sshll.u32 %s282, 4
          %s291 = int_to_ptr.vmem [resolvable:$true] %s290
          %293 = dma.hbm_to_vmem [thread:$0]  %s288, 256, %s291, %s279
        $region32: #{tpu_custom_call.1} parent=23 // pred_fallthru
          _
        // Predicated region
        $region33: #{tpu_custom_call.1} parent=23 // pred_check
          %p294 = pneg %p137
        $region34: #{tpu_custom_call.1} parent=23 // pred_check_branch
          %296 = sbr.rel (%p294) target = $region36
        $region35: #{tpu_custom_call.1} parent=23 // pred_region
          %s297 = sand.u32 %s23, 1
          %s298 = scalar_lea.sflag [#allocation9], %s297
          %s299 = sand.u32 %s127, 1
          %s300 = smul.addr %s299, 32
          %s301 = scalar_lea.vmem [#allocation8], %s300
          %s302 = smul.u32 2, %s23
          %s304 = ssub.s32 512, 512
          %305 = vsyncadd %s298, %s304
          %s306 = smul.addr %s302, 128
          %s307 = scalar_lea.hbm %s4, %s306
          %s308 = sshll.u32 %s301, 4
          %s309 = int_to_ptr.vmem [resolvable:$true] %s308
          %314 = dma.hbm_to_vmem [thread:$0]  %s307, 512, %s309, %s298, 1024, 256, 16
        $region36: #{tpu_custom_call.1} parent=23 // pred_fallthru
          _
        // Predicated region
        $region37: #{tpu_custom_call.1} parent=23 // pred_check
          %p315 = pneg %p163
        $region38: #{tpu_custom_call.1} parent=23 // pred_check_branch
          %317 = sbr.rel (%p315) target = $region40
        $region39: #{tpu_custom_call.1} parent=23 // pred_region
          %s318 = sand.u32 %s23, 1
          %s319 = scalar_lea.sflag [#allocation9], %s318
          %s320 = sand.u32 %s153, 1
          %s321 = smul.addr %s320, 32
          %s322 = scalar_lea.vmem [#allocation10], %s321
          %s323 = smul.u32 2, %s23
          %s325 = ssub.s32 512, 512
          %326 = vsyncadd %s319, %s325
          %s327 = smul.addr %s323, 128
          %s328 = scalar_lea.hbm %s5, %s327
          %s329 = sshll.u32 %s322, 4
          %s330 = int_to_ptr.vmem [resolvable:$true] %s329
          %335 = dma.hbm_to_vmem [thread:$0]  %s328, 512, %s330, %s319, 1024, 256, 16
        $region40: #{tpu_custom_call.1} parent=23 // pred_fallthru
          _
        // Predicated region
        $region41: #{tpu_custom_call.1} parent=23 // pred_check
          %p336 = pneg %p189
        $region42: #{tpu_custom_call.1} parent=23 // pred_check_branch
          %338 = sbr.rel (%p336) target = $region44
        $region43: #{tpu_custom_call.1} parent=23 // pred_region
          %s339 = smul.u32 2, %s23
          %p340 = scmp.lt.s32.totalorder %s339, 7
          %s341 = scalar_select %p340, %s339, 7
          %s342 = scalar_lea.vmem %s6, %s341
          %s343 = smul.u32 2, %s23
        $region44: #{tpu_custom_call.1} parent=23 // pred_fallthru
          _
      $region24: #{tpu_custom_call.1} parent=5 // pred_fallthru
        _
      %p344 = scmp.le.s32.totalorder 1, %s23
      %p345 = scmp.lt.s32.totalorder %s23, 5
      %p346 = pnand %p344, %p345
      %p347 = pneg %p346
      // Predicated region
      $region45: #{tpu_custom_call.1} parent=5 // pred_check
        _
      $region46: #{tpu_custom_call.1} parent=5 // pred_check_branch
        %349 = sbr.rel (%p346) target = $region48
      $region47: #{tpu_custom_call.1} parent=5 // pred_region
        %s350 = ssub.s32 %s23, 1
        // Predicated region
        $region49: #{tpu_custom_call.1} parent=47 // pred_check
          %p351 = pneg %p44
        $region50: #{tpu_custom_call.1} parent=47 // pred_check_branch
          %353 = sbr.rel (%p351) target = $region52
        $region51: #{tpu_custom_call.1} parent=47 // pred_region
          %354 = dma.done [#allocation3], 64
        $region52: #{tpu_custom_call.1} parent=47 // pred_fallthru
          _
        %s355 = sand.u32 %s28, 1
        %s356 = scalar_lea.sflag [#allocation6], %s355
        %s357 = sand.u32 %s57, 1
        %s358 = smul.addr %s357, 128
        %s359 = scalar_lea.vmem [#allocation5], %s358
        // Predicated region
        $region53: #{tpu_custom_call.1} parent=47 // pred_check
          %p360 = pneg %p70
        $region54: #{tpu_custom_call.1} parent=47 // pred_check_branch
          %362 = sbr.rel (%p360) target = $region56
        $region55: #{tpu_custom_call.1} parent=47 // pred_region
          %363 = dma.done %s356, 2048
        $region56: #{tpu_custom_call.1} parent=47 // pred_fallthru
          _
        %s364 = sand.u32 %s28, 1
        %s365 = scalar_lea.sflag [#allocation6], %s364
        %s366 = sand.u32 %s83, 1
        %s367 = smul.addr %s366, 16
        %s368 = scalar_lea.vmem [#allocation7], %s367
        // Predicated region
        $region57: #{tpu_custom_call.1} parent=47 // pred_check
          %p369 = pneg %p96
        $region58: #{tpu_custom_call.1} parent=47 // pred_check_branch
          %371 = sbr.rel (%p369) target = $region60
        $region59: #{tpu_custom_call.1} parent=47 // pred_region
          %372 = dma.done %s365, 256
        $region60: #{tpu_custom_call.1} parent=47 // pred_fallthru
          _
        %s373 = sand.u32 %s28, 1
        %s374 = scalar_lea.sflag [#allocation9], %s373
        %s375 = sand.u32 %s130, 1
        %s376 = smul.addr %s375, 32
        %s377 = scalar_lea.vmem [#allocation8], %s376
        // Predicated region
        $region61: #{tpu_custom_call.1} parent=47 // pred_check
          %p378 = pneg %p143
        $region62: #{tpu_custom_call.1} parent=47 // pred_check_branch
          %380 = sbr.rel (%p378) target = $region64
        $region63: #{tpu_custom_call.1} parent=47 // pred_region
          %381 = dma.done %s374, 512
        $region64: #{tpu_custom_call.1} parent=47 // pred_fallthru
          _
        %s382 = sand.u32 %s28, 1
        %s383 = scalar_lea.sflag [#allocation9], %s382
        %s384 = sand.u32 %s156, 1
        %s385 = smul.addr %s384, 32
        %s386 = scalar_lea.vmem [#allocation10], %s385
        // Predicated region
        $region65: #{tpu_custom_call.1} parent=47 // pred_check
          %p387 = pneg %p169
        $region66: #{tpu_custom_call.1} parent=47 // pred_check_branch
          %389 = sbr.rel (%p387) target = $region68
        $region67: #{tpu_custom_call.1} parent=47 // pred_region
          %390 = dma.done %s383, 512
        $region68: #{tpu_custom_call.1} parent=47 // pred_fallthru
          _
        %p391 = pneg %p44
        %p392 = pneg %p41
        %s393 = sand.u32 %s28, 1
        %s394 = scalar_lea.sflag [#allocation6], %s393
        %s395 = sand.u32 %s57, 1
        %s396 = smul.addr %s395, 128
        %s397 = scalar_lea.vmem [#allocation5], %s396
        %p398 = pneg %p70
        %p399 = pneg %p67
        %s400 = sand.u32 %s28, 1
        %s401 = scalar_lea.sflag [#allocation6], %s400
        %s402 = sand.u32 %s83, 1
        %s403 = smul.addr %s402, 16
        %s404 = scalar_lea.vmem [#allocation7], %s403
        %p405 = pneg %p96
        %p406 = pneg %p93
        %p407 = pneg %p117
        %p408 = pneg %p114
        %s409 = sand.u32 %s28, 1
        %s410 = scalar_lea.sflag [#allocation9], %s409
        %s411 = sand.u32 %s130, 1
        %s412 = smul.addr %s411, 32
        %s413 = scalar_lea.vmem [#allocation8], %s412
        %p414 = pneg %p143
        %p415 = pneg %p140
        %s416 = sand.u32 %s28, 1
        %s417 = scalar_lea.sflag [#allocation9], %s416
        %s418 = sand.u32 %s156, 1
        %s419 = smul.addr %s418, 32
        %s420 = scalar_lea.vmem [#allocation10], %s419
        %p421 = pneg %p169
        %p422 = pneg %p166
        %s423 = smul.u32 2, %s28
        %p424 = scmp.lt.s32.totalorder %s423, 7
        %s425 = scalar_select %p424, %s423, 7
        %s426 = scalar_lea.vmem %s6, %s425
        %p427 = pneg %p195
        %p428 = pneg %p192
        %p429 = pneg %p221
        %p430 = pneg %p218
        %s431 = sand.u32 %s208, 1
        %s432 = scalar_lea.sflag [#allocation4], %s431
        %s433 = sand.u32 %s208, 1
        %s434 = smul.addr %s433, 4
        %s435 = scalar_lea.vmem [#allocation11], %s434
        %s436 = smul.u32 2, %s28
        %s437 = smul.u32 2, %s28
        %s438 = smul.u32 2, %s28
        %s439 = smul.u32 2, %s28
        %s440 = smul.u32 2, %s28
        %p441 = scmp.lt.s32.totalorder %s440, 7
        %s442 = scalar_select %p441, %s440, 7
        %s443 = scalar_lea.vmem %s6, %s442
        %s444 = smul.u32 2, %s28
        %s445 = smul.u32 2, %s28
        %v446 = vld [vmem:[%s359] sm:$0xff]
        %v447 = vld [vmem:[%s359 + $0x8] sm:$0xff]
        %v448 = vld [vmem:[%s359 + $0x10] sm:$0xff]
        %v449 = vld [vmem:[%s359 + $0x18] sm:$0xff]
        %v450 = vld [vmem:[%s359 + $0x20] sm:$0xff]
        %v451 = vld [vmem:[%s359 + $0x28] sm:$0xff]
        %v452 = vld [vmem:[%s359 + $0x30] sm:$0xff]
        %v453 = vld [vmem:[%s359 + $0x38] sm:$0xff]
        %v454 = vld [vmem:[%s359 + $0x40] sm:$0xff]
        %v455 = vld [vmem:[%s359 + $0x48] sm:$0xff]
        %v456 = vld [vmem:[%s359 + $0x50] sm:$0xff]
        %v457 = vld [vmem:[%s359 + $0x58] sm:$0xff]
        %v458 = vld [vmem:[%s359 + $0x60] sm:$0xff]
        %v459 = vld [vmem:[%s359 + $0x68] sm:$0xff]
        %v460 = vld [vmem:[%s359 + $0x70] sm:$0xff]
        %v461 = vld [vmem:[%s359 + $0x78] sm:$0xff]
        %v462 = vmax.f32 %v446, %v450
        %v463 = vmax.f32 %v448, %v452
        %v464 = vmax.f32 %v462, %v454
        %v465 = vmax.f32 %v463, %v456
        %v466 = vmax.f32 %v464, %v458
        %v467 = vmax.f32 %v465, %v460
        %v468 = vmax.f32 %v466, %v467
        %v469 = vrot.slane %v468, 4
        %v470 = vmax.f32 %v468, %v469
        %v471 = vrot.slane %v470, 2
        %v472 = vmax.f32 %v470, %v471
        %v473 = vrot.slane %v472, 1
        %v474 = vmax.f32 %v472, %v473
        %v475 = vmax.f32 %v447, %v451
        %v476 = vmax.f32 %v449, %v453
        %v477 = vmax.f32 %v475, %v455
        %v478 = vmax.f32 %v476, %v457
        %v479 = vmax.f32 %v477, %v459
        %v480 = vmax.f32 %v478, %v461
        %v481 = vmax.f32 %v479, %v480
        %v482 = vrot.slane %v481, 4
        %v483 = vmax.f32 %v481, %v482
        %v484 = vrot.slane %v483, 2
        %v485 = vmax.f32 %v483, %v484
        %v486 = vrot.slane %v485, 1
        %v487 = vmax.f32 %v485, %v486
        %v488 = vsub.f32 %v446, %v474
        %v489 = vsub.f32 %v447, %v487
        %v490 = vsub.f32 %v448, %v474
        %v491 = vsub.f32 %v449, %v487
        %v492 = vsub.f32 %v450, %v474
        %v493 = vsub.f32 %v451, %v487
        %v494 = vsub.f32 %v452, %v474
        %v495 = vsub.f32 %v453, %v487
        %v496 = vsub.f32 %v454, %v474
        %v497 = vsub.f32 %v455, %v487
        %v498 = vsub.f32 %v456, %v474
        %v499 = vsub.f32 %v457, %v487
        %v500 = vsub.f32 %v458, %v474
        %v501 = vsub.f32 %v459, %v487
        %v502 = vsub.f32 %v460, %v474
        %v503 = vsub.f32 %v461, %v487
        %v504 = vmul.f32 %v488, 1.442695
        %v505 = vpow.pop %v504
        %v506 = vmul.f32 %v489, 1.442695
        %v507 = vpow.pop %v506
        %v508 = vmul.f32 %v490, 1.442695
        %v509 = vpow.pop %v508
        %v510 = vmul.f32 %v491, 1.442695
        %v511 = vpow.pop %v510
        %v512 = vmul.f32 %v492, 1.442695
        %v513 = vpow.pop %v512
        %v514 = vmul.f32 %v493, 1.442695
        %v515 = vpow.pop %v514
        %v516 = vmul.f32 %v494, 1.442695
        %v517 = vpow.pop %v516
        %v518 = vmul.f32 %v495, 1.442695
        %v519 = vpow.pop %v518
        %v520 = vmul.f32 %v496, 1.442695
        %v521 = vpow.pop %v520
        %v522 = vmul.f32 %v497, 1.442695
        %v523 = vpow.pop %v522
        %v524 = vmul.f32 %v498, 1.442695
        %v525 = vpow.pop %v524
        %v526 = vmul.f32 %v499, 1.442695
        %v527 = vpow.pop %v526
        %v528 = vmul.f32 %v500, 1.442695
        %v529 = vpow.pop %v528
        %v530 = vmul.f32 %v501, 1.442695
        %v531 = vpow.pop %v530
        %v532 = vmul.f32 %v502, 1.442695
        %v533 = vpow.pop %v532
        %v534 = vmul.f32 %v503, 1.442695
        %v535 = vpow.pop %v534
        %v536 = vadd.f32 %v505, %v509
        %v537 = vadd.f32 %v536, %v513
        %v538 = vadd.f32 %v537, %v517
        %v539 = vadd.f32 %v538, %v521
        %v540 = vadd.f32 %v539, %v525
        %v541 = vadd.f32 %v540, %v529
        %v542 = vadd.f32 %v541, %v533
        %v543 = vrot.slane %v542, 4
        %v544 = vadd.f32 %v542, %v543
        %v545 = vrot.slane %v544, 2
        %v546 = vadd.f32 %v544, %v545
        %v547 = vrot.slane %v546, 1
        %v548 = vadd.f32 %v546, %v547
        %v549 = vadd.f32 %v507, %v511
        %v550 = vadd.f32 %v549, %v515
        %v551 = vadd.f32 %v550, %v519
        %v552 = vadd.f32 %v551, %v523
        %v553 = vadd.f32 %v552, %v527
        %v554 = vadd.f32 %v553, %v531
        %v555 = vadd.f32 %v554, %v535
        %v556 = vrot.slane %v555, 4
        %v557 = vadd.f32 %v555, %v556
        %v558 = vrot.slane %v557, 2
        %v559 = vadd.f32 %v557, %v558
        %v560 = vrot.slane %v559, 1
        %v561 = vadd.f32 %v559, %v560
        %v562 = vrcp.pop %v548
        %v563 = vrcp.pop %v561
        %v564 = vld [vmem:[%s368] sm:$0xff]
        %v565 = vld [vmem:[%s368 + $0x8] sm:$0xff]
        %v568 = vcombine.low %v564, %v565
        %v569 = vcombine.high %v564, %v565
        %v571 = vunpack.c.l.s4 1966171168
        %v572 = vunpack.c.0.s8 %v571
        %v573 = vlaneseq
        %v574 = vshrl.u32 %v573, 7
        %v575 = vsub.s32 %v572, %v574
        %v576 = vrot.slane %v568, %v575
        %v578 = vunpack.c.l.s4 1966171168
        %v579 = vunpack.c.0.s8 %v578
        %v580 = vlaneseq
        %v581 = vshrl.u32 %v580, 7
        %v582 = vsub.s32 %v579, %v581
        %v583 = vrot.slane %v569, %v582
        %v584 = vcombine.high %v576, %v576
        %v585 = vcombine.high %v583, %v583
        %v587 = vunpack.c.l.s4 1966171168
        %v588 = vunpack.c.0.s8 %v587
        %v589 = vlaneseq
        %v590 = vshrl.u32 %v589, 7
        %v591 = vsub.s32 %v588, %v590
        %v592 = vrot.slane %v576, %v591
        %v594 = vunpack.c.l.s4 1966171168
        %v595 = vunpack.c.0.s8 %v594
        %v596 = vlaneseq
        %v597 = vshrl.u32 %v596, 7
        %v598 = vsub.s32 %v595, %v597
        %v599 = vrot.slane %v583, %v598
        %v601 = vunpack.c.l.s4 1966171168
        %v602 = vunpack.c.0.s8 %v601
        %v603 = vlaneseq
        %v604 = vshrl.u32 %v603, 7
        %v605 = vsub.s32 %v602, %v604
        %v606 = vrot.slane %v584, %v605
        %v608 = vunpack.c.l.s4 1966171168
        %v609 = vunpack.c.0.s8 %v608
        %v610 = vlaneseq
        %v611 = vshrl.u32 %v610, 7
        %v612 = vsub.s32 %v609, %v611
        %v613 = vrot.slane %v585, %v612
        %v614 = vcombine.high %v592, %v592
        %v615 = vcombine.high %v599, %v599
        %v616 = vcombine.high %v606, %v606
        %v617 = vcombine.high %v613, %v613
        %v618 = vlaneseq
        %v619 = vshrl.u32 %v618, 7
        %v620 = vsub.s32 0, %v619
        %v621 = vrot.slane %v592, %v620
        %v622 = vlaneseq
        %v623 = vshrl.u32 %v622, 7
        %v624 = vsub.s32 1, %v623
        %v625 = vrot.slane %v592, %v624
        %v626 = vlaneseq
        %v627 = vshrl.u32 %v626, 7
        %v628 = vsub.s32 0, %v627
        %v629 = vrot.slane %v606, %v628
        %v630 = vlaneseq
        %v631 = vshrl.u32 %v630, 7
        %v632 = vsub.s32 1, %v631
        %v633 = vrot.slane %v606, %v632
        %v634 = vlaneseq
        %v635 = vshrl.u32 %v634, 7
        %v636 = vsub.s32 0, %v635
        %v637 = vrot.slane %v614, %v636
        %v638 = vlaneseq
        %v639 = vshrl.u32 %v638, 7
        %v640 = vsub.s32 1, %v639
        %v641 = vrot.slane %v614, %v640
        %v642 = vlaneseq
        %v643 = vshrl.u32 %v642, 7
        %v644 = vsub.s32 0, %v643
        %v645 = vrot.slane %v616, %v644
        %v646 = vlaneseq
        %v647 = vshrl.u32 %v646, 7
        %v648 = vsub.s32 1, %v647
        %v649 = vrot.slane %v616, %v648
        %v650 = vlaneseq
        %v651 = vshrl.u32 %v650, 7
        %v652 = vsub.s32 0, %v651
        %v653 = vrot.slane %v599, %v652
        %v654 = vlaneseq
        %v655 = vshrl.u32 %v654, 7
        %v656 = vsub.s32 1, %v655
        %v657 = vrot.slane %v599, %v656
        %v658 = vlaneseq
        %v659 = vshrl.u32 %v658, 7
        %v660 = vsub.s32 0, %v659
        %v661 = vrot.slane %v613, %v660
        %v662 = vlaneseq
        %v663 = vshrl.u32 %v662, 7
        %v664 = vsub.s32 1, %v663
        %v665 = vrot.slane %v613, %v664
        %v666 = vlaneseq
        %v667 = vshrl.u32 %v666, 7
        %v668 = vsub.s32 0, %v667
        %v669 = vrot.slane %v615, %v668
        %v670 = vlaneseq
        %v671 = vshrl.u32 %v670, 7
        %v672 = vsub.s32 1, %v671
        %v673 = vrot.slane %v615, %v672
        %v674 = vlaneseq
        %v675 = vshrl.u32 %v674, 7
        %v676 = vsub.s32 0, %v675
        %v677 = vrot.slane %v617, %v676
        %v678 = vlaneseq
        %v679 = vshrl.u32 %v678, 7
        %v680 = vsub.s32 1, %v679
        %v681 = vrot.slane %v617, %v680
        %v698 = vmul.f32 %v621, %v505
        %v699 = vmul.f32 %v625, %v507
        %v700 = vmul.f32 %v621, %v509
        %v701 = vmul.f32 %v625, %v511
        %v702 = vmul.f32 %v621, %v513
        %v703 = vmul.f32 %v625, %v515
        %v704 = vmul.f32 %v621, %v517
        %v705 = vmul.f32 %v625, %v519
        %v706 = vmul.f32 %v621, %v521
        %v707 = vmul.f32 %v625, %v523
        %v708 = vmul.f32 %v621, %v525
        %v709 = vmul.f32 %v625, %v527
        %v710 = vmul.f32 %v621, %v529
        %v711 = vmul.f32 %v625, %v531
        %v712 = vmul.f32 %v621, %v533
        %v713 = vmul.f32 %v625, %v535
        %v714 = vmul.f32 %v629, %v505
        %v715 = vmul.f32 %v633, %v507
        %v716 = vmul.f32 %v629, %v509
        %v717 = vmul.f32 %v633, %v511
        %v718 = vmul.f32 %v629, %v513
        %v719 = vmul.f32 %v633, %v515
        %v720 = vmul.f32 %v629, %v517
        %v721 = vmul.f32 %v633, %v519
        %v722 = vmul.f32 %v629, %v521
        %v723 = vmul.f32 %v633, %v523
        %v724 = vmul.f32 %v629, %v525
        %v725 = vmul.f32 %v633, %v527
        %v726 = vmul.f32 %v629, %v529
        %v727 = vmul.f32 %v633, %v531
        %v728 = vmul.f32 %v629, %v533
        %v729 = vmul.f32 %v633, %v535
        %v730 = vmul.f32 %v637, %v505
        %v731 = vmul.f32 %v641, %v507
        %v732 = vmul.f32 %v637, %v509
        %v733 = vmul.f32 %v641, %v511
        %v734 = vmul.f32 %v637, %v513
        %v735 = vmul.f32 %v641, %v515
        %v736 = vmul.f32 %v637, %v517
        %v737 = vmul.f32 %v641, %v519
        %v738 = vmul.f32 %v637, %v521
        %v739 = vmul.f32 %v641, %v523
        %v740 = vmul.f32 %v637, %v525
        %v741 = vmul.f32 %v641, %v527
        %v742 = vmul.f32 %v637, %v529
        %v743 = vmul.f32 %v641, %v531
        %v744 = vmul.f32 %v637, %v533
        %v745 = vmul.f32 %v641, %v535
        %v746 = vmul.f32 %v645, %v505
        %v747 = vmul.f32 %v649, %v507
        %v748 = vmul.f32 %v645, %v509
        %v749 = vmul.f32 %v649, %v511
        %v750 = vmul.f32 %v645, %v513
        %v751 = vmul.f32 %v649, %v515
        %v752 = vmul.f32 %v645, %v517
        %v753 = vmul.f32 %v649, %v519
        %v754 = vmul.f32 %v645, %v521
        %v755 = vmul.f32 %v649, %v523
        %v756 = vmul.f32 %v645, %v525
        %v757 = vmul.f32 %v649, %v527
        %v758 = vmul.f32 %v645, %v529
        %v759 = vmul.f32 %v649, %v531
        %v760 = vmul.f32 %v645, %v533
        %v761 = vmul.f32 %v649, %v535
        %v762 = vmul.f32 %v653, %v505
        %v763 = vmul.f32 %v657, %v507
        %v764 = vmul.f32 %v653, %v509
        %v765 = vmul.f32 %v657, %v511
        %v766 = vmul.f32 %v653, %v513
        %v767 = vmul.f32 %v657, %v515
        %v768 = vmul.f32 %v653, %v517
        %v769 = vmul.f32 %v657, %v519
        %v770 = vmul.f32 %v653, %v521
        %v771 = vmul.f32 %v657, %v523
        %v772 = vmul.f32 %v653, %v525
        %v773 = vmul.f32 %v657, %v527
        %v774 = vmul.f32 %v653, %v529
        %v775 = vmul.f32 %v657, %v531
        %v776 = vmul.f32 %v653, %v533
        %v777 = vmul.f32 %v657, %v535
        %v778 = vmul.f32 %v661, %v505
        %v779 = vmul.f32 %v665, %v507
        %v780 = vmul.f32 %v661, %v509
        %v781 = vmul.f32 %v665, %v511
        %v782 = vmul.f32 %v661, %v513
        %v783 = vmul.f32 %v665, %v515
        %v784 = vmul.f32 %v661, %v517
        %v785 = vmul.f32 %v665, %v519
        %v786 = vmul.f32 %v661, %v521
        %v787 = vmul.f32 %v665, %v523
        %v788 = vmul.f32 %v661, %v525
        %v789 = vmul.f32 %v665, %v527
        %v790 = vmul.f32 %v661, %v529
        %v791 = vmul.f32 %v665, %v531
        %v792 = vmul.f32 %v661, %v533
        %v793 = vmul.f32 %v665, %v535
        %v794 = vmul.f32 %v669, %v505
        %v795 = vmul.f32 %v673, %v507
        %v796 = vmul.f32 %v669, %v509
        %v797 = vmul.f32 %v673, %v511
        %v798 = vmul.f32 %v669, %v513
        %v799 = vmul.f32 %v673, %v515
        %v800 = vmul.f32 %v669, %v517
        %v801 = vmul.f32 %v673, %v519
        %v802 = vmul.f32 %v669, %v521
        %v803 = vmul.f32 %v673, %v523
        %v804 = vmul.f32 %v669, %v525
        %v805 = vmul.f32 %v673, %v527
        %v806 = vmul.f32 %v669, %v529
        %v807 = vmul.f32 %v673, %v531
        %v808 = vmul.f32 %v669, %v533
        %v809 = vmul.f32 %v673, %v535
        %v810 = vmul.f32 %v677, %v505
        %v811 = vmul.f32 %v681, %v507
        %v812 = vmul.f32 %v677, %v509
        %v813 = vmul.f32 %v681, %v511
        %v814 = vmul.f32 %v677, %v513
        %v815 = vmul.f32 %v681, %v515
        %v816 = vmul.f32 %v677, %v517
        %v817 = vmul.f32 %v681, %v519
        %v818 = vmul.f32 %v677, %v521
        %v819 = vmul.f32 %v681, %v523
        %v820 = vmul.f32 %v677, %v525
        %v821 = vmul.f32 %v681, %v527
        %v822 = vmul.f32 %v677, %v529
        %v823 = vmul.f32 %v681, %v531
        %v824 = vmul.f32 %v677, %v533
        %v825 = vmul.f32 %v681, %v535
        %v826 = vpack.c.bf16 %v700, %v698
        %v827 = vpack.c.bf16 %v701, %v699
        %v828 = vpack.c.bf16 %v704, %v702
        %v829 = vpack.c.bf16 %v705, %v703
        %v830 = vpack.c.bf16 %v708, %v706
        %v831 = vpack.c.bf16 %v709, %v707
        %v832 = vpack.c.bf16 %v712, %v710
        %v833 = vpack.c.bf16 %v713, %v711
        %v834 = vpack.c.bf16 %v716, %v714
        %v835 = vpack.c.bf16 %v717, %v715
        %v836 = vpack.c.bf16 %v720, %v718
        %v837 = vpack.c.bf16 %v721, %v719
        %v838 = vpack.c.bf16 %v724, %v722
        %v839 = vpack.c.bf16 %v725, %v723
        %v840 = vpack.c.bf16 %v728, %v726
        %v841 = vpack.c.bf16 %v729, %v727
        %v842 = vpack.c.bf16 %v732, %v730
        %v843 = vpack.c.bf16 %v733, %v731
        %v844 = vpack.c.bf16 %v736, %v734
        %v845 = vpack.c.bf16 %v737, %v735
        %v846 = vpack.c.bf16 %v740, %v738
        %v847 = vpack.c.bf16 %v741, %v739
        %v848 = vpack.c.bf16 %v744, %v742
        %v849 = vpack.c.bf16 %v745, %v743
        %v850 = vpack.c.bf16 %v748, %v746
        %v851 = vpack.c.bf16 %v749, %v747
        %v852 = vpack.c.bf16 %v752, %v750
        %v853 = vpack.c.bf16 %v753, %v751
        %v854 = vpack.c.bf16 %v756, %v754
        %v855 = vpack.c.bf16 %v757, %v755
        %v856 = vpack.c.bf16 %v760, %v758
        %v857 = vpack.c.bf16 %v761, %v759
        %v858 = vpack.c.bf16 %v764, %v762
        %v859 = vpack.c.bf16 %v765, %v763
        %v860 = vpack.c.bf16 %v768, %v766
        %v861 = vpack.c.bf16 %v769, %v767
        %v862 = vpack.c.bf16 %v772, %v770
        %v863 = vpack.c.bf16 %v773, %v771
        %v864 = vpack.c.bf16 %v776, %v774
        %v865 = vpack.c.bf16 %v777, %v775
        %v866 = vpack.c.bf16 %v780, %v778
        %v867 = vpack.c.bf16 %v781, %v779
        %v868 = vpack.c.bf16 %v784, %v782
        %v869 = vpack.c.bf16 %v785, %v783
        %v870 = vpack.c.bf16 %v788, %v786
        %v871 = vpack.c.bf16 %v789, %v787
        %v872 = vpack.c.bf16 %v792, %v790
        %v873 = vpack.c.bf16 %v793, %v791
        %v874 = vpack.c.bf16 %v796, %v794
        %v875 = vpack.c.bf16 %v797, %v795
        %v876 = vpack.c.bf16 %v800, %v798
        %v877 = vpack.c.bf16 %v801, %v799
        %v878 = vpack.c.bf16 %v804, %v802
        %v879 = vpack.c.bf16 %v805, %v803
        %v880 = vpack.c.bf16 %v808, %v806
        %v881 = vpack.c.bf16 %v809, %v807
        %v882 = vpack.c.bf16 %v812, %v810
        %v883 = vpack.c.bf16 %v813, %v811
        %v884 = vpack.c.bf16 %v816, %v814
        %v885 = vpack.c.bf16 %v817, %v815
        %v886 = vpack.c.bf16 %v820, %v818
        %v887 = vpack.c.bf16 %v821, %v819
        %v888 = vpack.c.bf16 %v824, %v822
        %v889 = vpack.c.bf16 %v825, %v823
        %v890 = vld [vmem:[#allocation2] sm:$0xf]
        %v893 = vunpack.c.l.s4 1966171168
        %v894 = vunpack.c.0.s8 %v893
        %v895 = vlaneseq
        %v896 = vshrl.u32 %v895, 7
        %v897 = vsub.s32 %v894, %v896
        %v898 = vrot.slane %v890, %v897
        %v899 = vcombine.high %v898, %v898
        %v901 = vunpack.c.l.s4 1966171168
        %v902 = vunpack.c.0.s8 %v901
        %v903 = vlaneseq
        %v904 = vshrl.u32 %v903, 7
        %v905 = vsub.s32 %v902, %v904
        %v906 = vrot.slane %v898, %v905
        %v908 = vunpack.c.l.s4 1966171168
        %v909 = vunpack.c.0.s8 %v908
        %v910 = vlaneseq
        %v911 = vshrl.u32 %v910, 7
        %v912 = vsub.s32 %v909, %v911
        %v913 = vrot.slane %v899, %v912
        %v914 = vcombine.high %v906, %v906
        %v915 = vcombine.high %v913, %v913
        %920 = vmatprep.subr.bf16.mxu0 %v827
        %921 = vmatpush1.bf16.msra.mxu0 %v826
        %922 = vmatprep.subr.bf16.mxu0 %v829
        %923 = vmatpush1.bf16.msra.mxu0 %v828
        %924 = vmatprep.subr.bf16.mxu0 %v831
        %925 = vmatpush1.bf16.msra.mxu0 %v830
        %926 = vmatprep.subr.bf16.mxu0 %v833
        %927 = vmatpush1.bf16.msra.mxu0 %v832
        %928 = vmatprep.subr.bf16.mxu0 %v835
        %929 = vmatpush1.bf16.msra.mxu0 %v834
        %930 = vmatprep.subr.bf16.mxu0 %v837
        %931 = vmatpush1.bf16.msra.mxu0 %v836
        %932 = vmatprep.subr.bf16.mxu0 %v839
        %933 = vmatpush1.bf16.msra.mxu0 %v838
        %934 = vmatprep.subr.bf16.mxu0 %v841
        %935 = vmatpush1.bf16.msra.mxu0 %v840
        %936 = vmatprep.subr.bf16.mxu0 %v843
        %937 = vmatpush1.bf16.msra.mxu0 %v842
        %938 = vmatprep.subr.bf16.mxu0 %v845
        %939 = vmatpush1.bf16.msra.mxu0 %v844
        %940 = vmatprep.subr.bf16.mxu0 %v847
        %941 = vmatpush1.bf16.msra.mxu0 %v846
        %942 = vmatprep.subr.bf16.mxu0 %v849
        %943 = vmatpush1.bf16.msra.mxu0 %v848
        %944 = vmatprep.subr.bf16.mxu0 %v851
        %945 = vmatpush1.bf16.msra.mxu0 %v850
        %946 = vmatprep.subr.bf16.mxu0 %v853
        %947 = vmatpush1.bf16.msra.mxu0 %v852
        %948 = vmatprep.subr.bf16.mxu0 %v855
        %949 = vmatpush1.bf16.msra.mxu0 %v854
        %950 = vmatprep.subr.bf16.mxu0 %v857
        %951 = vmatpush1.bf16.msra.mxu0 %v856
        %952 = vmatprep.mubr.bf16.mxu0 %v913
        %953 = vmatmul.mubr.bf16.gmra.mrb[0].mxu0 %v906
        %v954 = vpop.f32.mrb[0].mxu0
        %v955 = vadd.f32 0.0, %v954
        %v956 = vpop.f32.mrb[0].mxu0
        %v957 = vadd.f32 0.0, %v956
        %v958 = vpop.f32.mrb[0].mxu0
        %v959 = vpop.f32.mrb[0].mxu0
        %960 = vdwg.mxu0
        %961 = vmatprep.subr.bf16.mxu0 %v859
        %962 = vmatpush1.bf16.msra.mxu0 %v858
        %963 = vmatprep.subr.bf16.mxu0 %v861
        %964 = vmatpush1.bf16.msra.mxu0 %v860
        %965 = vmatprep.subr.bf16.mxu0 %v863
        %966 = vmatpush1.bf16.msra.mxu0 %v862
        %967 = vmatprep.subr.bf16.mxu0 %v865
        %968 = vmatpush1.bf16.msra.mxu0 %v864
        %969 = vmatprep.subr.bf16.mxu0 %v867
        %970 = vmatpush1.bf16.msra.mxu0 %v866
        %971 = vmatprep.subr.bf16.mxu0 %v869
        %972 = vmatpush1.bf16.msra.mxu0 %v868
        %973 = vmatprep.subr.bf16.mxu0 %v871
        %974 = vmatpush1.bf16.msra.mxu0 %v870
        %975 = vmatprep.subr.bf16.mxu0 %v873
        %976 = vmatpush1.bf16.msra.mxu0 %v872
        %977 = vmatprep.subr.bf16.mxu0 %v875
        %978 = vmatpush1.bf16.msra.mxu0 %v874
        %979 = vmatprep.subr.bf16.mxu0 %v877
        %980 = vmatpush1.bf16.msra.mxu0 %v876
        %981 = vmatprep.subr.bf16.mxu0 %v879
        %982 = vmatpush1.bf16.msra.mxu0 %v878
        %983 = vmatprep.subr.bf16.mxu0 %v881
        %984 = vmatpush1.bf16.msra.mxu0 %v880
        %985 = vmatprep.subr.bf16.mxu0 %v883
        %986 = vmatpush1.bf16.msra.mxu0 %v882
        %987 = vmatprep.subr.bf16.mxu0 %v885
        %988 = vmatpush1.bf16.msra.mxu0 %v884
        %989 = vmatprep.subr.bf16.mxu0 %v887
        %990 = vmatpush1.bf16.msra.mxu0 %v886
        %991 = vmatprep.subr.bf16.mxu0 %v889
        %992 = vmatpush1.bf16.msra.mxu0 %v888
        %993 = vmatprep.mubr.bf16.mxu0 %v915
        %994 = vmatmul.mubr.bf16.gmra.mrb[0].mxu0 %v914
        %v995 = vpop.f32.mrb[0].mxu0
        %v996 = vadd.f32 %v955, %v995
        %v997 = vpop.f32.mrb[0].mxu0
        %v998 = vadd.f32 %v957, %v997
        %v999 = vpop.f32.mrb[0].mxu0
        %v1000 = vpop.f32.mrb[0].mxu0
        %1001 = vdwg.mxu0
        %v1002 = vmul.f32 %v996, %v562
        %v1003 = vmul.f32 %v998, %v563
        %v1004 = vadd.f32 %v1002, 0.0
        %v1005 = vadd.f32 %v1003, 0.0
        %v1006 = vld [vmem:[%s377] sm:$0xff]
        %v1007 = vld [vmem:[%s377 + $0x8] sm:$0xff]
        %v1008 = vld [vmem:[%s377 + $0x10] sm:$0xff]
        %v1009 = vld [vmem:[%s377 + $0x18] sm:$0xff]
        %v1010 = vmax.f32 %v1006, %v1008
        %v1011 = vrot.slane %v1010, 4
        %v1012 = vmax.f32 %v1010, %v1011
        %v1013 = vrot.slane %v1012, 2
        %v1014 = vmax.f32 %v1012, %v1013
        %v1015 = vrot.slane %v1014, 1
        %v1016 = vmax.f32 %v1014, %v1015
        %v1017 = vmax.f32 %v1007, %v1009
        %v1018 = vrot.slane %v1017, 4
        %v1019 = vmax.f32 %v1017, %v1018
        %v1020 = vrot.slane %v1019, 2
        %v1021 = vmax.f32 %v1019, %v1020
        %v1022 = vrot.slane %v1021, 1
        %v1023 = vmax.f32 %v1021, %v1022
        %v1024 = vsub.f32 %v1006, %v1016
        %v1025 = vsub.f32 %v1007, %v1023
        %v1026 = vsub.f32 %v1008, %v1016
        %v1027 = vsub.f32 %v1009, %v1023
        %v1028 = vmul.f32 %v1024, 1.442695
        %v1029 = vpow.pop %v1028
        %v1030 = vmul.f32 %v1025, 1.442695
        %v1031 = vpow.pop %v1030
        %v1032 = vmul.f32 %v1026, 1.442695
        %v1033 = vpow.pop %v1032
        %v1034 = vmul.f32 %v1027, 1.442695
        %v1035 = vpow.pop %v1034
        %v1036 = vadd.f32 %v1029, %v1033
        %v1037 = vrot.slane %v1036, 4
        %v1038 = vadd.f32 %v1036, %v1037
        %v1039 = vrot.slane %v1038, 2
        %v1040 = vadd.f32 %v1038, %v1039
        %v1041 = vrot.slane %v1040, 1
        %v1042 = vadd.f32 %v1040, %v1041
        %v1043 = vadd.f32 %v1031, %v1035
        %v1044 = vrot.slane %v1043, 4
        %v1045 = vadd.f32 %v1043, %v1044
        %v1046 = vrot.slane %v1045, 2
        %v1047 = vadd.f32 %v1045, %v1046
        %v1048 = vrot.slane %v1047, 1
        %v1049 = vadd.f32 %v1047, %v1048
        %v1050 = vrcp.pop %v1042
        %v1051 = vrcp.pop %v1049
        %v1052 = vld [vmem:[%s386] sm:$0xff]
        %v1053 = vld [vmem:[%s386 + $0x8] sm:$0xff]
        %v1054 = vld [vmem:[%s386 + $0x10] sm:$0xff]
        %v1055 = vld [vmem:[%s386 + $0x18] sm:$0xff]
        %v1060 = vcombine.low %v1052, %v1053
        %v1061 = vcombine.high %v1052, %v1053
        %v1063 = vunpack.c.l.s4 1966171168
        %v1064 = vunpack.c.0.s8 %v1063
        %v1065 = vlaneseq
        %v1066 = vshrl.u32 %v1065, 7
        %v1067 = vsub.s32 %v1064, %v1066
        %v1068 = vrot.slane %v1060, %v1067
        %v1070 = vunpack.c.l.s4 1966171168
        %v1071 = vunpack.c.0.s8 %v1070
        %v1072 = vlaneseq
        %v1073 = vshrl.u32 %v1072, 7
        %v1074 = vsub.s32 %v1071, %v1073
        %v1075 = vrot.slane %v1061, %v1074
        %v1076 = vcombine.high %v1068, %v1068
        %v1077 = vcombine.high %v1075, %v1075
        %v1079 = vunpack.c.l.s4 1966171168
        %v1080 = vunpack.c.0.s8 %v1079
        %v1081 = vlaneseq
        %v1082 = vshrl.u32 %v1081, 7
        %v1083 = vsub.s32 %v1080, %v1082
        %v1084 = vrot.slane %v1068, %v1083
        %v1086 = vunpack.c.l.s4 1966171168
        %v1087 = vunpack.c.0.s8 %v1086
        %v1088 = vlaneseq
        %v1089 = vshrl.u32 %v1088, 7
        %v1090 = vsub.s32 %v1087, %v1089
        %v1091 = vrot.slane %v1075, %v1090
        %v1093 = vunpack.c.l.s4 1966171168
        %v1094 = vunpack.c.0.s8 %v1093
        %v1095 = vlaneseq
        %v1096 = vshrl.u32 %v1095, 7
        %v1097 = vsub.s32 %v1094, %v1096
        %v1098 = vrot.slane %v1076, %v1097
        %v1100 = vunpack.c.l.s4 1966171168
        %v1101 = vunpack.c.0.s8 %v1100
        %v1102 = vlaneseq
        %v1103 = vshrl.u32 %v1102, 7
        %v1104 = vsub.s32 %v1101, %v1103
        %v1105 = vrot.slane %v1077, %v1104
        %v1106 = vcombine.high %v1084, %v1084
        %v1107 = vcombine.high %v1091, %v1091
        %v1108 = vcombine.high %v1098, %v1098
        %v1109 = vcombine.high %v1105, %v1105
        %v1110 = vcombine.low %v1054, %v1055
        %v1111 = vcombine.high %v1054, %v1055
        %v1113 = vunpack.c.l.s4 1966171168
        %v1114 = vunpack.c.0.s8 %v1113
        %v1115 = vlaneseq
        %v1116 = vshrl.u32 %v1115, 7
        %v1117 = vsub.s32 %v1114, %v1116
        %v1118 = vrot.slane %v1110, %v1117
        %v1120 = vunpack.c.l.s4 1966171168
        %v1121 = vunpack.c.0.s8 %v1120
        %v1122 = vlaneseq
        %v1123 = vshrl.u32 %v1122, 7
        %v1124 = vsub.s32 %v1121, %v1123
        %v1125 = vrot.slane %v1111, %v1124
        %v1126 = vcombine.high %v1118, %v1118
        %v1127 = vcombine.high %v1125, %v1125
        %v1129 = vunpack.c.l.s4 1966171168
        %v1130 = vunpack.c.0.s8 %v1129
        %v1131 = vlaneseq
        %v1132 = vshrl.u32 %v1131, 7
        %v1133 = vsub.s32 %v1130, %v1132
        %v1134 = vrot.slane %v1118, %v1133
        %v1136 = vunpack.c.l.s4 1966171168
        %v1137 = vunpack.c.0.s8 %v1136
        %v1138 = vlaneseq
        %v1139 = vshrl.u32 %v1138, 7
        %v1140 = vsub.s32 %v1137, %v1139
        %v1141 = vrot.slane %v1125, %v1140
        %v1143 = vunpack.c.l.s4 1966171168
        %v1144 = vunpack.c.0.s8 %v1143
        %v1145 = vlaneseq
        %v1146 = vshrl.u32 %v1145, 7
        %v1147 = vsub.s32 %v1144, %v1146
        %v1148 = vrot.slane %v1126, %v1147
        %v1150 = vunpack.c.l.s4 1966171168
        %v1151 = vunpack.c.0.s8 %v1150
        %v1152 = vlaneseq
        %v1153 = vshrl.u32 %v1152, 7
        %v1154 = vsub.s32 %v1151, %v1153
        %v1155 = vrot.slane %v1127, %v1154
        %v1156 = vcombine.high %v1134, %v1134
        %v1157 = vcombine.high %v1141, %v1141
        %v1158 = vcombine.high %v1148, %v1148
        %v1159 = vcombine.high %v1155, %v1155
        %v1160 = vlaneseq
        %v1161 = vshrl.u32 %v1160, 7
        %v1162 = vsub.s32 0, %v1161
        %v1163 = vrot.slane %v1084, %v1162
        %v1164 = vlaneseq
        %v1165 = vshrl.u32 %v1164, 7
        %v1166 = vsub.s32 1, %v1165
        %v1167 = vrot.slane %v1084, %v1166
        %v1168 = vlaneseq
        %v1169 = vshrl.u32 %v1168, 7
        %v1170 = vsub.s32 0, %v1169
        %v1171 = vrot.slane %v1098, %v1170
        %v1172 = vlaneseq
        %v1173 = vshrl.u32 %v1172, 7
        %v1174 = vsub.s32 1, %v1173
        %v1175 = vrot.slane %v1098, %v1174
        %v1176 = vlaneseq
        %v1177 = vshrl.u32 %v1176, 7
        %v1178 = vsub.s32 0, %v1177
        %v1179 = vrot.slane %v1106, %v1178
        %v1180 = vlaneseq
        %v1181 = vshrl.u32 %v1180, 7
        %v1182 = vsub.s32 1, %v1181
        %v1183 = vrot.slane %v1106, %v1182
        %v1184 = vlaneseq
        %v1185 = vshrl.u32 %v1184, 7
        %v1186 = vsub.s32 0, %v1185
        %v1187 = vrot.slane %v1108, %v1186
        %v1188 = vlaneseq
        %v1189 = vshrl.u32 %v1188, 7
        %v1190 = vsub.s32 1, %v1189
        %v1191 = vrot.slane %v1108, %v1190
        %v1192 = vlaneseq
        %v1193 = vshrl.u32 %v1192, 7
        %v1194 = vsub.s32 0, %v1193
        %v1195 = vrot.slane %v1091, %v1194
        %v1196 = vlaneseq
        %v1197 = vshrl.u32 %v1196, 7
        %v1198 = vsub.s32 1, %v1197
        %v1199 = vrot.slane %v1091, %v1198
        %v1200 = vlaneseq
        %v1201 = vshrl.u32 %v1200, 7
        %v1202 = vsub.s32 0, %v1201
        %v1203 = vrot.slane %v1105, %v1202
        %v1204 = vlaneseq
        %v1205 = vshrl.u32 %v1204, 7
        %v1206 = vsub.s32 1, %v1205
        %v1207 = vrot.slane %v1105, %v1206
        %v1208 = vlaneseq
        %v1209 = vshrl.u32 %v1208, 7
        %v1210 = vsub.s32 0, %v1209
        %v1211 = vrot.slane %v1107, %v1210
        %v1212 = vlaneseq
        %v1213 = vshrl.u32 %v1212, 7
        %v1214 = vsub.s32 1, %v1213
        %v1215 = vrot.slane %v1107, %v1214
        %v1216 = vlaneseq
        %v1217 = vshrl.u32 %v1216, 7
        %v1218 = vsub.s32 0, %v1217
        %v1219 = vrot.slane %v1109, %v1218
        %v1220 = vlaneseq
        %v1221 = vshrl.u32 %v1220, 7
        %v1222 = vsub.s32 1, %v1221
        %v1223 = vrot.slane %v1109, %v1222
        %v1224 = vlaneseq
        %v1225 = vshrl.u32 %v1224, 7
        %v1226 = vsub.s32 0, %v1225
        %v1227 = vrot.slane %v1134, %v1226
        %v1228 = vlaneseq
        %v1229 = vshrl.u32 %v1228, 7
        %v1230 = vsub.s32 1, %v1229
        %v1231 = vrot.slane %v1134, %v1230
        %v1232 = vlaneseq
        %v1233 = vshrl.u32 %v1232, 7
        %v1234 = vsub.s32 0, %v1233
        %v1235 = vrot.slane %v1148, %v1234
        %v1236 = vlaneseq
        %v1237 = vshrl.u32 %v1236, 7
        %v1238 = vsub.s32 1, %v1237
        %v1239 = vrot.slane %v1148, %v1238
        %v1240 = vlaneseq
        %v1241 = vshrl.u32 %v1240, 7
        %v1242 = vsub.s32 0, %v1241
        %v1243 = vrot.slane %v1156, %v1242
        %v1244 = vlaneseq
        %v1245 = vshrl.u32 %v1244, 7
        %v1246 = vsub.s32 1, %v1245
        %v1247 = vrot.slane %v1156, %v1246
        %v1248 = vlaneseq
        %v1249 = vshrl.u32 %v1248, 7
        %v1250 = vsub.s32 0, %v1249
        %v1251 = vrot.slane %v1158, %v1250
        %v1252 = vlaneseq
        %v1253 = vshrl.u32 %v1252, 7
        %v1254 = vsub.s32 1, %v1253
        %v1255 = vrot.slane %v1158, %v1254
        %v1256 = vlaneseq
        %v1257 = vshrl.u32 %v1256, 7
        %v1258 = vsub.s32 0, %v1257
        %v1259 = vrot.slane %v1141, %v1258
        %v1260 = vlaneseq
        %v1261 = vshrl.u32 %v1260, 7
        %v1262 = vsub.s32 1, %v1261
        %v1263 = vrot.slane %v1141, %v1262
        %v1264 = vlaneseq
        %v1265 = vshrl.u32 %v1264, 7
        %v1266 = vsub.s32 0, %v1265
        %v1267 = vrot.slane %v1155, %v1266
        %v1268 = vlaneseq
        %v1269 = vshrl.u32 %v1268, 7
        %v1270 = vsub.s32 1, %v1269
        %v1271 = vrot.slane %v1155, %v1270
        %v1272 = vlaneseq
        %v1273 = vshrl.u32 %v1272, 7
        %v1274 = vsub.s32 0, %v1273
        %v1275 = vrot.slane %v1157, %v1274
        %v1276 = vlaneseq
        %v1277 = vshrl.u32 %v1276, 7
        %v1278 = vsub.s32 1, %v1277
        %v1279 = vrot.slane %v1157, %v1278
        %v1280 = vlaneseq
        %v1281 = vshrl.u32 %v1280, 7
        %v1282 = vsub.s32 0, %v1281
        %v1283 = vrot.slane %v1159, %v1282
        %v1284 = vlaneseq
        %v1285 = vshrl.u32 %v1284, 7
        %v1286 = vsub.s32 1, %v1285
        %v1287 = vrot.slane %v1159, %v1286
        %v1320 = vmul.f32 %v1163, %v1029
        %v1321 = vmul.f32 %v1167, %v1031
        %v1322 = vmul.f32 %v1163, %v1033
        %v1323 = vmul.f32 %v1167, %v1035
        %v1324 = vmul.f32 %v1171, %v1029
        %v1325 = vmul.f32 %v1175, %v1031
        %v1326 = vmul.f32 %v1171, %v1033
        %v1327 = vmul.f32 %v1175, %v1035
        %v1328 = vmul.f32 %v1179, %v1029
        %v1329 = vmul.f32 %v1183, %v1031
        %v1330 = vmul.f32 %v1179, %v1033
        %v1331 = vmul.f32 %v1183, %v1035
        %v1332 = vmul.f32 %v1187, %v1029
        %v1333 = vmul.f32 %v1191, %v1031
        %v1334 = vmul.f32 %v1187, %v1033
        %v1335 = vmul.f32 %v1191, %v1035
        %v1336 = vmul.f32 %v1195, %v1029
        %v1337 = vmul.f32 %v1199, %v1031
        %v1338 = vmul.f32 %v1195, %v1033
        %v1339 = vmul.f32 %v1199, %v1035
        %v1340 = vmul.f32 %v1203, %v1029
        %v1341 = vmul.f32 %v1207, %v1031
        %v1342 = vmul.f32 %v1203, %v1033
        %v1343 = vmul.f32 %v1207, %v1035
        %v1344 = vmul.f32 %v1211, %v1029
        %v1345 = vmul.f32 %v1215, %v1031
        %v1346 = vmul.f32 %v1211, %v1033
        %v1347 = vmul.f32 %v1215, %v1035
        %v1348 = vmul.f32 %v1219, %v1029
        %v1349 = vmul.f32 %v1223, %v1031
        %v1350 = vmul.f32 %v1219, %v1033
        %v1351 = vmul.f32 %v1223, %v1035
        %v1352 = vmul.f32 %v1227, %v1029
        %v1353 = vmul.f32 %v1231, %v1031
        %v1354 = vmul.f32 %v1227, %v1033
        %v1355 = vmul.f32 %v1231, %v1035
        %v1356 = vmul.f32 %v1235, %v1029
        %v1357 = vmul.f32 %v1239, %v1031
        %v1358 = vmul.f32 %v1235, %v1033
        %v1359 = vmul.f32 %v1239, %v1035
        %v1360 = vmul.f32 %v1243, %v1029
        %v1361 = vmul.f32 %v1247, %v1031
        %v1362 = vmul.f32 %v1243, %v1033
        %v1363 = vmul.f32 %v1247, %v1035
        %v1364 = vmul.f32 %v1251, %v1029
        %v1365 = vmul.f32 %v1255, %v1031
        %v1366 = vmul.f32 %v1251, %v1033
        %v1367 = vmul.f32 %v1255, %v1035
        %v1368 = vmul.f32 %v1259, %v1029
        %v1369 = vmul.f32 %v1263, %v1031
        %v1370 = vmul.f32 %v1259, %v1033
        %v1371 = vmul.f32 %v1263, %v1035
        %v1372 = vmul.f32 %v1267, %v1029
        %v1373 = vmul.f32 %v1271, %v1031
        %v1374 = vmul.f32 %v1267, %v1033
        %v1375 = vmul.f32 %v1271, %v1035
        %v1376 = vmul.f32 %v1275, %v1029
        %v1377 = vmul.f32 %v1279, %v1031
        %v1378 = vmul.f32 %v1275, %v1033
        %v1379 = vmul.f32 %v1279, %v1035
        %v1380 = vmul.f32 %v1283, %v1029
        %v1381 = vmul.f32 %v1287, %v1031
        %v1382 = vmul.f32 %v1283, %v1033
        %v1383 = vmul.f32 %v1287, %v1035
        %v1384 = vpack.c.bf16 %v1322, %v1320
        %v1385 = vpack.c.bf16 %v1323, %v1321
        %v1386 = vpack.c.bf16 %v1326, %v1324
        %v1387 = vpack.c.bf16 %v1327, %v1325
        %v1388 = vpack.c.bf16 %v1330, %v1328
        %v1389 = vpack.c.bf16 %v1331, %v1329
        %v1390 = vpack.c.bf16 %v1334, %v1332
        %v1391 = vpack.c.bf16 %v1335, %v1333
        %v1392 = vpack.c.bf16 %v1338, %v1336
        %v1393 = vpack.c.bf16 %v1339, %v1337
        %v1394 = vpack.c.bf16 %v1342, %v1340
        %v1395 = vpack.c.bf16 %v1343, %v1341
        %v1396 = vpack.c.bf16 %v1346, %v1344
        %v1397 = vpack.c.bf16 %v1347, %v1345
        %v1398 = vpack.c.bf16 %v1350, %v1348
        %v1399 = vpack.c.bf16 %v1351, %v1349
        %v1400 = vpack.c.bf16 %v1354, %v1352
        %v1401 = vpack.c.bf16 %v1355, %v1353
        %v1402 = vpack.c.bf16 %v1358, %v1356
        %v1403 = vpack.c.bf16 %v1359, %v1357
        %v1404 = vpack.c.bf16 %v1362, %v1360
        %v1405 = vpack.c.bf16 %v1363, %v1361
        %v1406 = vpack.c.bf16 %v1366, %v1364
        %v1407 = vpack.c.bf16 %v1367, %v1365
        %v1408 = vpack.c.bf16 %v1370, %v1368
        %v1409 = vpack.c.bf16 %v1371, %v1369
        %v1410 = vpack.c.bf16 %v1374, %v1372
        %v1411 = vpack.c.bf16 %v1375, %v1373
        %v1412 = vpack.c.bf16 %v1378, %v1376
        %v1413 = vpack.c.bf16 %v1379, %v1377
        %v1414 = vpack.c.bf16 %v1382, %v1380
        %v1415 = vpack.c.bf16 %v1383, %v1381
        %v1416 = vld [vmem:[%s3] sm:$0x3]
        %v1419 = vunpack.c.l.s4 1966171168
        %v1420 = vunpack.c.0.s8 %v1419
        %v1421 = vlaneseq
        %v1422 = vshrl.u32 %v1421, 7
        %v1423 = vsub.s32 %v1420, %v1422
        %v1424 = vrot.slane %v1416, %v1423
        %v1425 = vcombine.high %v1424, %v1424
        %v1427 = vunpack.c.l.s4 1966171168
        %v1428 = vunpack.c.0.s8 %v1427
        %v1429 = vlaneseq
        %v1430 = vshrl.u32 %v1429, 7
        %v1431 = vsub.s32 %v1428, %v1430
        %v1432 = vrot.slane %v1424, %v1431
        %v1434 = vunpack.c.l.s4 1966171168
        %v1435 = vunpack.c.0.s8 %v1434
        %v1436 = vlaneseq
        %v1437 = vshrl.u32 %v1436, 7
        %v1438 = vsub.s32 %v1435, %v1437
        %v1439 = vrot.slane %v1425, %v1438
        %1442 = vmatprep.subr.bf16.mxu0 %v1385
        %1443 = vmatpush1.bf16.msra.mxu0 %v1384
        %1444 = vmatprep.subr.bf16.mxu0 %v1387
        %1445 = vmatpush1.bf16.msra.mxu0 %v1386
        %1446 = vmatprep.subr.bf16.mxu0 %v1389
        %1447 = vmatpush1.bf16.msra.mxu0 %v1388
        %1448 = vmatprep.subr.bf16.mxu0 %v1391
        %1449 = vmatpush1.bf16.msra.mxu0 %v1390
        %1450 = vmatprep.subr.bf16.mxu0 %v1393
        %1451 = vmatpush1.bf16.msra.mxu0 %v1392
        %1452 = vmatprep.subr.bf16.mxu0 %v1395
        %1453 = vmatpush1.bf16.msra.mxu0 %v1394
        %1454 = vmatprep.subr.bf16.mxu0 %v1397
        %1455 = vmatpush1.bf16.msra.mxu0 %v1396
        %1456 = vmatprep.subr.bf16.mxu0 %v1399
        %1457 = vmatpush1.bf16.msra.mxu0 %v1398
        %1458 = vmatprep.subr.bf16.mxu0 %v1401
        %1459 = vmatpush1.bf16.msra.mxu0 %v1400
        %1460 = vmatprep.subr.bf16.mxu0 %v1403
        %1461 = vmatpush1.bf16.msra.mxu0 %v1402
        %1462 = vmatprep.subr.bf16.mxu0 %v1405
        %1463 = vmatpush1.bf16.msra.mxu0 %v1404
        %1464 = vmatprep.subr.bf16.mxu0 %v1407
        %1465 = vmatpush1.bf16.msra.mxu0 %v1406
        %1466 = vmatprep.subr.bf16.mxu0 %v1409
        %1467 = vmatpush1.bf16.msra.mxu0 %v1408
        %1468 = vmatprep.subr.bf16.mxu0 %v1411
        %1469 = vmatpush1.bf16.msra.mxu0 %v1410
        %1470 = vmatprep.subr.bf16.mxu0 %v1413
        %1471 = vmatpush1.bf16.msra.mxu0 %v1412
        %1472 = vmatprep.subr.bf16.mxu0 %v1415
        %1473 = vmatpush1.bf16.msra.mxu0 %v1414
        %1474 = vmatprep.mubr.bf16.mxu0 %v1439
        %1475 = vmatmul.mubr.bf16.gmra.mrb[0].mxu0 %v1432
        %v1476 = vpop.f32.mrb[0].mxu0
        %v1477 = vadd.f32 0.0, %v1476
        %v1478 = vpop.f32.mrb[0].mxu0
        %v1479 = vadd.f32 0.0, %v1478
        %v1480 = vpop.f32.mrb[0].mxu0
        %v1481 = vpop.f32.mrb[0].mxu0
        %1482 = vdwg.mxu0
        %v1483 = vmul.f32 %v1477, %v1050
        %v1484 = vmul.f32 %v1479, %v1051
        %v1485 = vadd.f32 %v1004, %v1483
        %v1486 = vadd.f32 %v1005, %v1484
        %v1487 = vld [vmem:[%s443] sm:$0x3]
        %v1489 = vlaneseq
        %v1490 = vshrl.u32 %v1489, 7
        %v1491 = vsub.s32 0, %v1490
        %v1492 = vrot.slane %v1487, %v1491
        %v1493 = vlaneseq
        %v1494 = vshrl.u32 %v1493, 7
        %v1495 = vsub.s32 1, %v1494
        %v1496 = vrot.slane %v1487, %v1495
        %v1499 = vadd.f32 %v1485, %v1492
        %v1500 = vadd.f32 %v1486, %v1496
        %v1503 = vcombine.low %v1499, %v1500
        %v1505 = vunpack.c.l.s4 1983009808
        %v1506 = vunpack.c.0.s8 %v1505
        %v1507 = vlaneseq
        %v1508 = vshrl.u32 %v1507, 7
        %v1509 = vsub.s32 %v1506, %v1508
        %v1510 = vrot.slane %v1503, %v1509
        %1512 = vst [vmem:[%s435] sm:$0xf] %v1510
        %s1513 = sand.u32 %s208, 1
        %s1514 = scalar_lea.sflag [#allocation4], %s1513
        %s1515 = sand.u32 %s208, 1
        %s1516 = smul.addr %s1515, 4
        %s1517 = scalar_lea.vmem [#allocation11], %s1516
        // Predicated region
        $region69: #{tpu_custom_call.1} parent=47 // pred_check
          %p1518 = pneg %p218
        $region70: #{tpu_custom_call.1} parent=47 // pred_check_branch
          %1520 = sbr.rel (%p1518) target = $region72
        $region71: #{tpu_custom_call.1} parent=47 // pred_region
          %s1521 = smul.u32 2, %s28
          %s1523 = ssub.s32 64, 64
          %1524 = vsyncadd %s1514, %s1523
          %s1525 = smul.addr %s1521, 32
          %s1526 = scalar_lea.hbm %s7, %s1525
          %s1528 = sshll.u32 %s1517, 4
          %s1529 = int_to_ptr.vmem [resolvable:$true] %s1528
          %1531 = dma.vmem_to_hbm [thread:$0]  %s1529, 64, %s1526, %s1514
        $region72: #{tpu_custom_call.1} parent=47 // pred_fallthru
          _
      $region48: #{tpu_custom_call.1} parent=5 // pred_fallthru
        _
      %p1532 = scmp.le.s32.totalorder 2, %s23
      // Predicated region
      $region73: #{tpu_custom_call.1} parent=5 // pred_check
        %p1533 = pneg %p1532
      $region74: #{tpu_custom_call.1} parent=5 // pred_check_branch
        %1535 = sbr.rel (%p1533) target = $region76
      $region75: #{tpu_custom_call.1} parent=5 // pred_region
        %s1536 = ssub.s32 %s23, 2
        // Predicated region
        $region77: #{tpu_custom_call.1} parent=75 // pred_check
          %p1537 = pneg %p224
        $region78: #{tpu_custom_call.1} parent=75 // pred_check_branch
          %1539 = sbr.rel (%p1537) target = $region80
        $region79: #{tpu_custom_call.1} parent=75 // pred_region
          %s1540 = sand.u32 %s209, 1
          %s1541 = scalar_lea.sflag [#allocation4], %s1540
          %s1542 = sand.u32 %s209, 1
          %s1543 = smul.addr %s1542, 4
          %s1544 = scalar_lea.vmem [#allocation11], %s1543
          %1545 = dma.done %s1541, 64
        $region80: #{tpu_custom_call.1} parent=75 // pred_fallthru
          _
      $region76: #{tpu_custom_call.1} parent=5 // pred_fallthru
        _
    $region6: #{tpu_custom_call.1} parent=1 // loop_footer
      %s27 = sadd.s32 1, %s23
    $region7: #{tpu_custom_call.1} parent=1 // loop_footer_branch
      %22 = sbr.rel target = $region3
    $region8: #{tpu_custom_call.1} parent=1 // loop_exit
      _
    %1546 = vsyncpa [#allocation3], 1
    %s1547 = scalar_lea.sflag [#allocation3], 1
    %1548 = vsyncpa %s1547, 1
    %1549 = vsyncpa [#allocation6], 1
    %s1550 = scalar_lea.sflag [#allocation6], 1
    %1551 = vsyncpa %s1550, 1
    %1552 = vsyncpa [#allocation9], 1
    %s1553 = scalar_lea.sflag [#allocation9], 1
    %1554 = vsyncpa %s1553, 1
    %1555 = vsyncpa [#allocation4], 1
    %s1556 = scalar_lea.sflag [#allocation4], 1
    %1557 = vsyncpa %s1556, 1

// kernel: tpu_custom_call.1
$region0: #{tpu_custom_call.1}
  #allocation0 [shape = 'u32[]', space=smem, size = 0x4, offset = 0x4, fixed_abs, tag = 'smem constant byte address 0x4 - core index']
  #allocation1 [shape = 'u32[144,128]{1,0:T(1,128)}', space=vmem, size = 0x12000, scoped, tag = 'internal scratch']
  %s0 = inlined_call_operand.hbm [shape: bf16[2,512], index: 0, kind: input, shape index: {}]
  %s1 = inlined_call_operand.hbm [shape: f32[64,1024], index: 1, kind: input, shape index: {}]
  %s2 = inlined_call_operand.hbm [shape: f32[8,1024], index: 2, kind: input, shape index: {}]
  %s3 = inlined_call_operand.vmem [shape: bf16[2,256], index: 3, kind: input, shape index: {}]
  %s4 = inlined_call_operand.hbm [shape: f32[16,1024], index: 4, kind: input, shape index: {}]
  %s5 = inlined_call_operand.hbm [shape: f32[16,1024], index: 5, kind: input, shape index: {}]
  %s6 = inlined_call_operand.vmem [shape: f32[1,1024], index: 6, kind: input, shape index: {}]
  %s7 = inlined_call_operand.hbm [shape: f32[2,1024], index: 7, kind: output, shape index: {}]
  %s8 = sld [smem:[#allocation0]]
  $region81: #{tpu_custom_call.1} parent=0
    _
  %s10 = ssub.s32 1, %s8
  %s11 = scalar_select 0, %s10, %s8
  $region1: #{tpu_custom_call.1} parent=0
    #allocation2 [shape = 'u8[2048]{0}', space=vmem, size = 0x800, scoped, tag = 'input window, operand 0, single buffered']
    #allocation3 [shape = 's32[2]{0}', space=sflag, size = 0x8, scoped, tag = 'scoped memory for tpu_custom_call.1']
    #allocation4 [shape = 's32[2]{0}', space=sflag, size = 0x8, scoped, tag = 'scoped memory for tpu_custom_call.1']
    #allocation5 [shape = 'u8[131072]{0}', space=vmem, size = 0x20000, scoped, tag = 'input window, operand 1']
    #allocation6 [shape = 's32[2]{0}', space=sflag, size = 0x8, scoped, tag = 'scoped memory for tpu_custom_call.1']
    #allocation7 [shape = 'u8[16384]{0}', space=vmem, size = 0x4000, scoped, tag = 'input window, operand 2']
    #allocation8 [shape = 'u8[32768]{0}', space=vmem, size = 0x8000, scoped, tag = 'input window, operand 4']
    #allocation9 [shape = 's32[2]{0}', space=sflag, size = 0x8, scoped, tag = 'scoped memory for tpu_custom_call.1']
    #allocation10 [shape = 'u8[32768]{0}', space=vmem, size = 0x8000, scoped, tag = 'input window, operand 5']
    #allocation11 [shape = 'u8[4096]{0}', space=vmem, size = 0x1000, scoped, tag = 'output window, operand 0']
    %12 = vsyncpa [#allocation3], 0
    %13 = vsyncpa [#allocation6], 0
    %s14 = scalar_lea.sflag [#allocation6], 1
    %15 = vsyncpa %s14, 0
    %16 = vsyncpa [#allocation9], 0
    %s17 = scalar_lea.sflag [#allocation9], 1
    %18 = vsyncpa %s17, 0
    %19 = vsyncpa [#allocation4], 0
    %s20 = scalar_lea.sflag [#allocation4], 1
    %21 = vsyncpa %s20, 0
    loop: start=0, step=1, limit=6
    $region2: #{tpu_custom_call.1} parent=1 // loop_pre_header
      _
    $region3: #{tpu_custom_call.1} parent=1 // loop_header
      %s23 = sphi 0, %s27
      %p24 = scmp.ge.s32.totalorder %s23, 6
      %s31 = sphi 0, %s31
      %s33 = sphi 0, %s31
      %s34 = sphi 0, %s33
      %s48 = sphi 0, %s34
      %s54 = sphi 0, %s56
      %s57 = sphi 0, %s54
      %s58 = sphi 0, %s57
      %s74 = sphi 0, %s58
      %s80 = sphi 0, %s82
      %s83 = sphi 0, %s80
      %s84 = sphi 0, %s83
      %s100 = sphi 0, %s84
      %s104 = sphi 0, %s104
      %s106 = sphi 0, %s104
      %s107 = sphi 0, %s106
      %s121 = sphi 0, %s107
      %s127 = sphi 0, %s129
      %s130 = sphi 0, %s127
      %s131 = sphi 0, %s130
      %s147 = sphi 0, %s131
      %s153 = sphi 0, %s155
      %s156 = sphi 0, %s153
      %s157 = sphi 0, %s156
      %s173 = sphi 0, %s157
      %s179 = sphi 0, %s181
      %s182 = sphi 0, %s179
      %s183 = sphi 0, %s182
      %s199 = sphi 0, %s183
      %s205 = sphi 0, %s207
      %s208 = sphi 0, %s205
      %s209 = sphi 0, %s208
      %s225 = sphi 0, %s209
    $region4: #{tpu_custom_call.1} parent=1 // loop_header_branch
      %26 = sbr.rel (%p24) target = $region8
    $region5: #{tpu_custom_call.1} parent=1 // loop_body
      %s28 = ssub.s32 %s23, 1
      %s29 = ssub.s32 %s23, 2
      %s30 = sadd.s32 %s23, 1
      %s32 = sadd.s32 %s31, 1
      %p35 = scmp.eq.s32.totalorder %s23, 3
      %p36 = scmp.ne.s32.totalorder %s31, %s33
      %p37 = scmp.eq.s32.totalorder %s23, 0
      %p38 = por %p36, %p37
      %p39 = scmp.ne.s32.totalorder %s31, %s33
      %p40 = scmp.eq.s32.totalorder %s28, 3
      %p41 = por %p39, %p40
      %p42 = scmp.ne.s32.totalorder %s33, %s34
      %p43 = scmp.eq.s32.totalorder %s28, 0
      %p44 = por %p42, %p43
      %p45 = scmp.ne.s32.totalorder %s33, %s34
      %p46 = scmp.eq.s32.totalorder %s29, 3
      %p47 = por %p45, %p46
      %p49 = scmp.ne.s32.totalorder %s34, %s48
      %p50 = scmp.eq.s32.totalorder %s29, 0
      %p51 = por %p49, %p50
      %s52 = ssub.s32 %s23, %s30
      %p53 = scmp.eq.s32.totalorder %s52, 0
      %s55 = sadd.s32 %s54, 1
      %s56 = scalar_select %p53, %s54, %s55
      %p59 = pneg %p53
      %p60 = scmp.eq.s32.totalorder %s23, 3
      %p61 = por %p59, %p60
      %p62 = scmp.ne.s32.totalorder %s54, %s57
      %p63 = scmp.eq.s32.totalorder %s23, 0
      %p64 = por %p62, %p63
      %p65 = scmp.ne.s32.totalorder %s54, %s57
      %p66 = scmp.eq.s32.totalorder %s28, 3
      %p67 = por %p65, %p66
      %p68 = scmp.ne.s32.totalorder %s57, %s58
      %p69 = scmp.eq.s32.totalorder %s28, 0
      %p70 = por %p68, %p69
      %p71 = scmp.ne.s32.totalorder %s57, %s58
      %p72 = scmp.eq.s32.totalorder %s29, 3
      %p73 = por %p71, %p72
      %p75 = scmp.ne.s32.totalorder %s58, %s74
      %p76 = scmp.eq.s32.totalorder %s29, 0
      %p77 = por %p75, %p76
      %s78 = ssub.s32 %s23, %s30
      %p79 = scmp.eq.s32.totalorder %s78, 0
      %s81 = sadd.s32 %s80, 1
      %s82 = scalar_select %p79, %s80, %s81
      %p85 = pneg %p79
      %p86 = scmp.eq.s32.totalorder %s23, 3
      %p87 = por %p85, %p86
      %p88 = scmp.ne.s32.totalorder %s80, %s83
      %p89 = scmp.eq.s32.totalorder %s23, 0
      %p90 = por %p88, %p89
      %p91 = scmp.ne.s32.totalorder %s80, %s83
      %p92 = scmp.eq.s32.totalorder %s28, 3
      %p93 = por %p91, %p92
      %p94 = scmp.ne.s32.totalorder %s83, %s84
      %p95 = scmp.eq.s32.totalorder %s28, 0
      %p96 = por %p94, %p95
      %p97 = scmp.ne.s32.totalorder %s83, %s84
      %p98 = scmp.eq.s32.totalorder %s29, 3
      %p99 = por %p97, %p98
      %p101 = scmp.ne.s32.totalorder %s84, %s100
      %p102 = scmp.eq.s32.totalorder %s29, 0
      %p103 = por %p101, %p102
      %s105 = sadd.s32 %s104, 1
      %p108 = scmp.eq.s32.totalorder %s23, 3
      %p109 = scmp.ne.s32.totalorder %s104, %s106
      %p110 = scmp.eq.s32.totalorder %s23, 0
      %p111 = por %p109, %p110
      %p112 = scmp.ne.s32.totalorder %s104, %s106
      %p113 = scmp.eq.s32.totalorder %s28, 3
      %p114 = por %p112, %p113
      %p115 = scmp.ne.s32.totalorder %s106, %s107
      %p116 = scmp.eq.s32.totalorder %s28, 0
      %p117 = por %p115, %p116
      %p118 = scmp.ne.s32.totalorder %s106, %s107
      %p119 = scmp.eq.s32.totalorder %s29, 3
      %p120 = por %p118, %p119
      %p122 = scmp.ne.s32.totalorder %s107, %s121
      %p123 = scmp.eq.s32.totalorder %s29, 0
      %p124 = por %p122, %p123
      %s125 = ssub.s32 %s23, %s30
      %p126 = scmp.eq.s32.totalorder %s125, 0
      %s128 = sadd.s32 %s127, 1
      %s129 = scalar_select %p126, %s127, %s128
      %p132 = pneg %p126
      %p133 = scmp.eq.s32.totalorder %s23, 3
      %p134 = por %p132, %p133
      %p135 = scmp.ne.s32.totalorder %s127, %s130
      %p136 = scmp.eq.s32.totalorder %s23, 0
      %p137 = por %p135, %p136
      %p138 = scmp.ne.s32.totalorder %s127, %s130
      %p139 = scmp.eq.s32.totalorder %s28, 3
      %p140 = por %p138, %p139
      %p141 = scmp.ne.s32.totalorder %s130, %s131
      %p142 = scmp.eq.s32.totalorder %s28, 0
      %p143 = por %p141, %p142
      %p144 = scmp.ne.s32.totalorder %s130, %s131
      %p145 = scmp.eq.s32.totalorder %s29, 3
      %p146 = por %p144, %p145
      %p148 = scmp.ne.s32.totalorder %s131, %s147
      %p149 = scmp.eq.s32.totalorder %s29, 0
      %p150 = por %p148, %p149
      %s151 = ssub.s32 %s23, %s30
      %p152 = scmp.eq.s32.totalorder %s151, 0
      %s154 = sadd.s32 %s153, 1
      %s155 = scalar_select %p152, %s153, %s154
      %p158 = pneg %p152
      %p159 = scmp.eq.s32.totalorder %s23, 3
      %p160 = por %p158, %p159
      %p161 = scmp.ne.s32.totalorder %s153, %s156
      %p162 = scmp.eq.s32.totalorder %s23, 0
      %p163 = por %p161, %p162
      %p164 = scmp.ne.s32.totalorder %s153, %s156
      %p165 = scmp.eq.s32.totalorder %s28, 3
      %p166 = por %p164, %p165
      %p167 = scmp.ne.s32.totalorder %s156, %s157
      %p168 = scmp.eq.s32.totalorder %s28, 0
      %p169 = por %p167, %p168
      %p170 = scmp.ne.s32.totalorder %s156, %s157
      %p171 = scmp.eq.s32.totalorder %s29, 3
      %p172 = por %p170, %p171
      %p174 = scmp.ne.s32.totalorder %s157, %s173
      %p175 = scmp.eq.s32.totalorder %s29, 0
      %p176 = por %p174, %p175
      %s177 = ssub.s32 %s23, %s30
      %p178 = scmp.eq.s32.totalorder %s177, 0
      %s180 = sadd.s32 %s179, 1
      %s181 = scalar_select %p178, %s179, %s180
      %p184 = pneg %p178
      %p185 = scmp.eq.s32.totalorder %s23, 3
      %p186 = por %p184, %p185
      %p187 = scmp.ne.s32.totalorder %s179, %s182
      %p188 = scmp.eq.s32.totalorder %s23, 0
      %p189 = por %p187, %p188
      %p190 = scmp.ne.s32.totalorder %s179, %s182
      %p191 = scmp.eq.s32.totalorder %s28, 3
      %p192 = por %p190, %p191
      %p193 = scmp.ne.s32.totalorder %s182, %s183
      %p194 = scmp.eq.s32.totalorder %s28, 0
      %p195 = por %p193, %p194
      %p196 = scmp.ne.s32.totalorder %s182, %s183
      %p197 = scmp.eq.s32.totalorder %s29, 3
      %p198 = por %p196, %p197
      %p200 = scmp.ne.s32.totalorder %s183, %s199
      %p201 = scmp.eq.s32.totalorder %s29, 0
      %p202 = por %p200, %p201
      %s203 = ssub.s32 %s23, %s30
      %p204 = scmp.eq.s32.totalorder %s203, 0
      %s206 = sadd.s32 %s205, 1
      %s207 = scalar_select %p204, %s205, %s206
      %p210 = pneg %p204
      %p211 = scmp.eq.s32.totalorder %s23, 3
      %p212 = por %p210, %p211
      %p213 = scmp.ne.s32.totalorder %s205, %s208
      %p214 = scmp.eq.s32.totalorder %s23, 0
      %p215 = por %p213, %p214
      %p216 = scmp.ne.s32.totalorder %s205, %s208
      %p217 = scmp.eq.s32.totalorder %s28, 3
      %p218 = por %p216, %p217
      %p219 = scmp.ne.s32.totalorder %s208, %s209
      %p220 = scmp.eq.s32.totalorder %s28, 0
      %p221 = por %p219, %p220
      %p222 = scmp.ne.s32.totalorder %s208, %s209
      %p223 = scmp.eq.s32.totalorder %s29, 3
      %p224 = por %p222, %p223
      %p226 = scmp.ne.s32.totalorder %s209, %s225
      %p227 = scmp.eq.s32.totalorder %s29, 0
      %p228 = por %p226, %p227
      %p229 = scmp.le.s32.totalorder 1, %s23
      %p230 = scmp.lt.s32.totalorder %s23, 5
      %p231 = pnand %p229, %p230
      %p232 = pneg %p231
      // Predicated region
      $region9: #{tpu_custom_call.1} parent=5 // pred_check
        _
      $region10: #{tpu_custom_call.1} parent=5 // pred_check_branch
        %234 = sbr.rel (%p231) target = $region12
      $region11: #{tpu_custom_call.1} parent=5 // pred_region
        %s235 = ssub.s32 %s23, 1
        // Predicated region
        $region13: #{tpu_custom_call.1} parent=11 // pred_check
          %p236 = pneg %p44
        $region14: #{tpu_custom_call.1} parent=11 // pred_check_branch
          %238 = sbr.rel (%p236) target = $region16
        $region15: #{tpu_custom_call.1} parent=11 // pred_region
          %s240 = ssub.s32 64, 64
          %241 = vsyncadd [#allocation3], %s240
          %s243 = sshll.u32 [#allocation2], 4
          %s244 = int_to_ptr.vmem [resolvable:$true] %s243
          %246 = dma.hbm_to_vmem [thread:$0]  %s0, 64, %s244, [#allocation3]
        $region16: #{tpu_custom_call.1} parent=11 // pred_fallthru
          _
        // Predicated region
        $region17: #{tpu_custom_call.1} parent=11 // pred_check
          %p247 = pneg %p117
        $region18: #{tpu_custom_call.1} parent=11 // pred_check_branch
          %249 = sbr.rel (%p247) target = $region20
        $region19: #{tpu_custom_call.1} parent=11 // pred_region
          _
        $region20: #{tpu_custom_call.1} parent=11 // pred_fallthru
          _
      $region12: #{tpu_custom_call.1} parent=5 // pred_fallthru
        _
      %p250 = scmp.lt.s32.totalorder %s23, 4
      // Predicated region
      $region21: #{tpu_custom_call.1} parent=5 // pred_check
        %p251 = pneg %p250
      $region22: #{tpu_custom_call.1} parent=5 // pred_check_branch
        %253 = sbr.rel (%p251) target = $region24
      $region23: #{tpu_custom_call.1} parent=5 // pred_region
        // Predicated region
        $region25: #{tpu_custom_call.1} parent=23 // pred_check
          %p254 = pneg %p64
        $region26: #{tpu_custom_call.1} parent=23 // pred_check_branch
          %256 = sbr.rel (%p254) target = $region28
        $region27: #{tpu_custom_call.1} parent=23 // pred_region
          %s257 = sand.u32 %s23, 1
          %s258 = scalar_lea.sflag [#allocation6], %s257
          %s259 = sand.u32 %s54, 1
          %s260 = smul.addr %s259, 128
          %s261 = scalar_lea.vmem [#allocation5], %s260
          %s262 = smul.u32 2, %s23
          %s264 = ssub.s32 2048, 2048
          %265 = vsyncadd %s258, %s264
          %s266 = smul.addr %s262, 128
          %s267 = scalar_lea.hbm %s1, %s266
          %s268 = sshll.u32 %s261, 4
          %s269 = int_to_ptr.vmem [resolvable:$true] %s268
          %274 = dma.hbm_to_vmem [thread:$0]  %s267, 2048, %s269, %s258, 1024, 256, 16
        $region28: #{tpu_custom_call.1} parent=23 // pred_fallthru
          _
        // Predicated region
        $region29: #{tpu_custom_call.1} parent=23 // pred_check
          %p275 = pneg %p90
        $region30: #{tpu_custom_call.1} parent=23 // pred_check_branch
          %277 = sbr.rel (%p275) target = $region32
        $region31: #{tpu_custom_call.1} parent=23 // pred_region
          %s278 = sand.u32 %s23, 1
          %s279 = scalar_lea.sflag [#allocation6], %s278
          %s280 = sand.u32 %s80, 1
          %s281 = smul.addr %s280, 16
          %s282 = scalar_lea.vmem [#allocation7], %s281
          %s283 = smul.u32 2, %s23
          %s285 = ssub.s32 256, 256
          %286 = vsyncadd %s279, %s285
          %s287 = smul.addr %s283, 128
          %s288 = scalar_lea.hbm %s2, %s287
          %s290 = sshll.u32 %s282, 4
          %s291 = int_to_ptr.vmem [resolvable:$true] %s290
          %293 = dma.hbm_to_vmem [thread:$0]  %s288, 256, %s291, %s279
        $region32: #{tpu_custom_call.1} parent=23 // pred_fallthru
          _
        // Predicated region
        $region33: #{tpu_custom_call.1} parent=23 // pred_check
          %p294 = pneg %p137
        $region34: #{tpu_custom_call.1} parent=23 // pred_check_branch
          %296 = sbr.rel (%p294) target = $region36
        $region35: #{tpu_custom_call.1} parent=23 // pred_region
          %s297 = sand.u32 %s23, 1
          %s298 = scalar_lea.sflag [#allocation9], %s297
          %s299 = sand.u32 %s127, 1
          %s300 = smul.addr %s299, 32
          %s301 = scalar_lea.vmem [#allocation8], %s300
          %s302 = smul.u32 2, %s23
          %s304 = ssub.s32 512, 512
          %305 = vsyncadd %s298, %s304
          %s306 = smul.addr %s302, 128
          %s307 = scalar_lea.hbm %s4, %s306
          %s308 = sshll.u32 %s301, 4
          %s309 = int_to_ptr.vmem [resolvable:$true] %s308
          %314 = dma.hbm_to_vmem [thread:$0]  %s307, 512, %s309, %s298, 1024, 256, 16
        $region36: #{tpu_custom_call.1} parent=23 // pred_fallthru
          _
        // Predicated region
        $region37: #{tpu_custom_call.1} parent=23 // pred_check
          %p315 = pneg %p163
        $region38: #{tpu_custom_call.1} parent=23 // pred_check_branch
          %317 = sbr.rel (%p315) target = $region40
        $region39: #{tpu_custom_call.1} parent=23 // pred_region
          %s318 = sand.u32 %s23, 1
          %s319 = scalar_lea.sflag [#allocation9], %s318
          %s320 = sand.u32 %s153, 1
          %s321 = smul.addr %s320, 32
          %s322 = scalar_lea.vmem [#allocation10], %s321
          %s323 = smul.u32 2, %s23
          %s325 = ssub.s32 512, 512
          %326 = vsyncadd %s319, %s325
          %s327 = smul.addr %s323, 128
          %s328 = scalar_lea.hbm %s5, %s327
          %s329 = sshll.u32 %s322, 4
          %s330 = int_to_ptr.vmem [resolvable:$true] %s329
          %335 = dma.hbm_to_vmem [thread:$0]  %s328, 512, %s330, %s319, 1024, 256, 16
        $region40: #{tpu_custom_call.1} parent=23 // pred_fallthru
          _
        // Predicated region
        $region41: #{tpu_custom_call.1} parent=23 // pred_check
          %p336 = pneg %p189
        $region42: #{tpu_custom_call.1} parent=23 // pred_check_branch
          %338 = sbr.rel (%p336) target = $region44
        $region43: #{tpu_custom_call.1} parent=23 // pred_region
          %s339 = smul.u32 2, %s23
          %p340 = scmp.lt.s32.totalorder %s339, 7
          %s341 = scalar_select %p340, %s339, 7
          %s342 = scalar_lea.vmem %s6, %s341
          %s343 = smul.u32 2, %s23
        $region44: #{tpu_custom_call.1} parent=23 // pred_fallthru
          _
      $region24: #{tpu_custom_call.1} parent=5 // pred_fallthru
        _
      %p344 = scmp.le.s32.totalorder 1, %s23
      %p345 = scmp.lt.s32.totalorder %s23, 5
      %p346 = pnand %p344, %p345
      %p347 = pneg %p346
      // Predicated region
      $region45: #{tpu_custom_call.1} parent=5 // pred_check
        _
      $region46: #{tpu_custom_call.1} parent=5 // pred_check_branch
        %349 = sbr.rel (%p346) target = $region48
      $region47: #{tpu_custom_call.1} parent=5 // pred_region
        %s350 = ssub.s32 %s23, 1
        // Predicated region
        $region49: #{tpu_custom_call.1} parent=47 // pred_check
          %p351 = pneg %p44
        $region50: #{tpu_custom_call.1} parent=47 // pred_check_branch
          %353 = sbr.rel (%p351) target = $region52
        $region51: #{tpu_custom_call.1} parent=47 // pred_region
          %354 = dma.done [#allocation3], 64
        $region52: #{tpu_custom_call.1} parent=47 // pred_fallthru
          _
        %s355 = sand.u32 %s28, 1
        %s356 = scalar_lea.sflag [#allocation6], %s355
        %s357 = sand.u32 %s57, 1
        %s358 = smul.addr %s357, 128
        %s359 = scalar_lea.vmem [#allocation5], %s358
        // Predicated region
        $region53: #{tpu_custom_call.1} parent=47 // pred_check
          %p360 = pneg %p70
        $region54: #{tpu_custom_call.1} parent=47 // pred_check_branch
          %362 = sbr.rel (%p360) target = $region56
        $region55: #{tpu_custom_call.1} parent=47 // pred_region
          %363 = dma.done %s356, 2048
        $region56: #{tpu_custom_call.1} parent=47 // pred_fallthru
          _
        %s364 = sand.u32 %s28, 1
        %s365 = scalar_lea.sflag [#allocation6], %s364
        %s366 = sand.u32 %s83, 1
        %s367 = smul.addr %s366, 16
        %s368 = scalar_lea.vmem [#allocation7], %s367
        // Predicated region
        $region57: #{tpu_custom_call.1} parent=47 // pred_check
          %p369 = pneg %p96
        $region58: #{tpu_custom_call.1} parent=47 // pred_check_branch
          %371 = sbr.rel (%p369) target = $region60
        $region59: #{tpu_custom_call.1} parent=47 // pred_region
          %372 = dma.done %s365, 256
        $region60: #{tpu_custom_call.1} parent=47 // pred_fallthru
          _
        %s373 = sand.u32 %s28, 1
        %s374 = scalar_lea.sflag [#allocation9], %s373
        %s375 = sand.u32 %s130, 1
        %s376 = smul.addr %s375, 32
        %s377 = scalar_lea.vmem [#allocation8], %s376
        // Predicated region
        $region61: #{tpu_custom_call.1} parent=47 // pred_check
          %p378 = pneg %p143
        $region62: #{tpu_custom_call.1} parent=47 // pred_check_branch
          %380 = sbr.rel (%p378) target = $region64
        $region63: #{tpu_custom_call.1} parent=47 // pred_region
          %381 = dma.done %s374, 512
        $region64: #{tpu_custom_call.1} parent=47 // pred_fallthru
          _
        %s382 = sand.u32 %s28, 1
        %s383 = scalar_lea.sflag [#allocation9], %s382
        %s384 = sand.u32 %s156, 1
        %s385 = smul.addr %s384, 32
        %s386 = scalar_lea.vmem [#allocation10], %s385
        // Predicated region
        $region65: #{tpu_custom_call.1} parent=47 // pred_check
          %p387 = pneg %p169
        $region66: #{tpu_custom_call.1} parent=47 // pred_check_branch
          %389 = sbr.rel (%p387) target = $region68
        $region67: #{tpu_custom_call.1} parent=47 // pred_region
          %390 = dma.done %s383, 512
        $region68: #{tpu_custom_call.1} parent=47 // pred_fallthru
          _
        %p391 = pneg %p44
        %p392 = pneg %p41
        %s393 = sand.u32 %s28, 1
        %s394 = scalar_lea.sflag [#allocation6], %s393
        %s395 = sand.u32 %s57, 1
        %s396 = smul.addr %s395, 128
        %s397 = scalar_lea.vmem [#allocation5], %s396
        %p398 = pneg %p70
        %p399 = pneg %p67
        %s400 = sand.u32 %s28, 1
        %s401 = scalar_lea.sflag [#allocation6], %s400
        %s402 = sand.u32 %s83, 1
        %s403 = smul.addr %s402, 16
        %s404 = scalar_lea.vmem [#allocation7], %s403
        %p405 = pneg %p96
        %p406 = pneg %p93
        %p407 = pneg %p117
        %p408 = pneg %p114
        %s409 = sand.u32 %s28, 1
        %s410 = scalar_lea.sflag [#allocation9], %s409
        %s411 = sand.u32 %s130, 1
        %s412 = smul.addr %s411, 32
        %s413 = scalar_lea.vmem [#allocation8], %s412
        %p414 = pneg %p143
        %p415 = pneg %p140
        %s416 = sand.u32 %s28, 1
        %s417 = scalar_lea.sflag [#allocation9], %s416
        %s418 = sand.u32 %s156, 1
        %s419 = smul.addr %s418, 32
        %s420 = scalar_lea.vmem [#allocation10], %s419
        %p421 = pneg %p169
        %p422 = pneg %p166
        %s423 = smul.u32 2, %s28
        %p424 = scmp.lt.s32.totalorder %s423, 7
        %s425 = scalar_select %p424, %s423, 7
        %s426 = scalar_lea.vmem %s6, %s425
        %p427 = pneg %p195
        %p428 = pneg %p192
        %p429 = pneg %p221
        %p430 = pneg %p218
        %s431 = sand.u32 %s208, 1
        %s432 = scalar_lea.sflag [#allocation4], %s431
        %s433 = sand.u32 %s208, 1
        %s434 = smul.addr %s433, 4
        %s435 = scalar_lea.vmem [#allocation11], %s434
        %s436 = smul.u32 2, %s28
        %s437 = smul.u32 2, %s28
        %s438 = smul.u32 2, %s28
        %s439 = smul.u32 2, %s28
        %s440 = smul.u32 2, %s28
        %p441 = scmp.lt.s32.totalorder %s440, 7
        %s442 = scalar_select %p441, %s440, 7
        %s443 = scalar_lea.vmem %s6, %s442
        %s444 = smul.u32 2, %s28
        %s445 = smul.u32 2, %s28
        %v446 = vld [vmem:[%s359] sm:$0xff]
        %v447 = vld [vmem:[%s359 + $0x8] sm:$0xff]
        %v448 = vld [vmem:[%s359 + $0x10] sm:$0xff]
        %v449 = vld [vmem:[%s359 + $0x18] sm:$0xff]
        %v450 = vld [vmem:[%s359 + $0x20] sm:$0xff]
        %v451 = vld [vmem:[%s359 + $0x28] sm:$0xff]
        %v452 = vld [vmem:[%s359 + $0x30] sm:$0xff]
        %v453 = vld [vmem:[%s359 + $0x38] sm:$0xff]
        %v454 = vld [vmem:[%s359 + $0x40] sm:$0xff]
        %v455 = vld [vmem:[%s359 + $0x48] sm:$0xff]
        %v456 = vld [vmem:[%s359 + $0x50] sm:$0xff]
        %v457 = vld [vmem:[%s359 + $0x58] sm:$0xff]
        %v458 = vld [vmem:[%s359 + $0x60] sm:$0xff]
        %v459 = vld [vmem:[%s359 + $0x68] sm:$0xff]
        %v460 = vld [vmem:[%s359 + $0x70] sm:$0xff]
        %v461 = vld [vmem:[%s359 + $0x78] sm:$0xff]
        %v462 = vmax.f32 %v446, %v450
        %v463 = vmax.f32 %v448, %v452
        %v464 = vmax.f32 %v462, %v454
        %v465 = vmax.f32 %v463, %v456
        %v466 = vmax.f32 %v464, %v458
        %v467 = vmax.f32 %v465, %v460
        %v468 = vmax.f32 %v466, %v467
        %v469 = vrot.slane %v468, 4
        %v470 = vmax.f32 %v468, %v469
        %v471 = vrot.slane %v470, 2
        %v472 = vmax.f32 %v470, %v471
        %v473 = vrot.slane %v472, 1
        %v474 = vmax.f32 %v472, %v473
        %v475 = vmax.f32 %v447, %v451
        %v476 = vmax.f32 %v449, %v453
        %v477 = vmax.f32 %v475, %v455
        %v478 = vmax.f32 %v476, %v457
        %v479 = vmax.f32 %v477, %v459
        %v480 = vmax.f32 %v478, %v461
        %v481 = vmax.f32 %v479, %v480
        %v482 = vrot.slane %v481, 4
        %v483 = vmax.f32 %v481, %v482
        %v484 = vrot.slane %v483, 2
        %v485 = vmax.f32 %v483, %v484
        %v486 = vrot.slane %v485, 1
        %v487 = vmax.f32 %v485, %v486
        %v488 = vsub.f32 %v446, %v474
        %v489 = vsub.f32 %v447, %v487
        %v490 = vsub.f32 %v448, %v474
        %v491 = vsub.f32 %v449, %v487
        %v492 = vsub.f32 %v450, %v474
        %v493 = vsub.f32 %v451, %v487
        %v494 = vsub.f32 %v452, %v474
        %v495 = vsub.f32 %v453, %v487
        %v496 = vsub.f32 %v454, %v474
        %v497 = vsub.f32 %v455, %v487
        %v498 = vsub.f32 %v456, %v474
        %v499 = vsub.f32 %v457, %v487
        %v500 = vsub.f32 %v458, %v474
        %v501 = vsub.f32 %v459, %v487
        %v502 = vsub.f32 %v460, %v474
        %v503 = vsub.f32 %v461, %v487
        %v504 = vmul.f32 %v488, 1.442695
        %v505 = vpow.pop %v504
        %v506 = vmul.f32 %v489, 1.442695
        %v507 = vpow.pop %v506
        %v508 = vmul.f32 %v490, 1.442695
        %v509 = vpow.pop %v508
        %v510 = vmul.f32 %v491, 1.442695
        %v511 = vpow.pop %v510
        %v512 = vmul.f32 %v492, 1.442695
        %v513 = vpow.pop %v512
        %v514 = vmul.f32 %v493, 1.442695
        %v515 = vpow.pop %v514
        %v516 = vmul.f32 %v494, 1.442695
        %v517 = vpow.pop %v516
        %v518 = vmul.f32 %v495, 1.442695
        %v519 = vpow.pop %v518
        %v520 = vmul.f32 %v496, 1.442695
        %v521 = vpow.pop %v520
        %v522 = vmul.f32 %v497, 1.442695
        %v523 = vpow.pop %v522
        %v524 = vmul.f32 %v498, 1.442695
        %v525 = vpow.pop %v524
        %v526 = vmul.f32 %v499, 1.442695
        %v527 = vpow.pop %v526
        %v528 = vmul.f32 %v500, 1.442695
        %v529 = vpow.pop %v528
        %v530 = vmul.f32 %v501, 1.442695
        %v531 = vpow.pop %v530
        %v532 = vmul.f32 %v502, 1.442695
        %v533 = vpow.pop %v532
        %v534 = vmul.f32 %v503, 1.442695
        %v535 = vpow.pop %v534
        %v536 = vadd.f32 %v505, %v509
        %v537 = vadd.f32 %v536, %v513
        %v538 = vadd.f32 %v537, %v517
        %v539 = vadd.f32 %v538, %v521
        %v540 = vadd.f32 %v539, %v525
        %v541 = vadd.f32 %v540, %v529
        %v542 = vadd.f32 %v541, %v533
        %v543 = vrot.slane %v542, 4
        %v544 = vadd.f32 %v542, %v543
        %v545 = vrot.slane %v544, 2
        %v546 = vadd.f32 %v544, %v545
        %v547 = vrot.slane %v546, 1
        %v548 = vadd.f32 %v546, %v547
        %v549 = vadd.f32 %v507, %v511
        %v550 = vadd.f32 %v549, %v515
        %v551 = vadd.f32 %v550, %v519
        %v552 = vadd.f32 %v551, %v523
        %v553 = vadd.f32 %v552, %v527
        %v554 = vadd.f32 %v553, %v531
        %v555 = vadd.f32 %v554, %v535
        %v556 = vrot.slane %v555, 4
        %v557 = vadd.f32 %v555, %v556
        %v558 = vrot.slane %v557, 2
        %v559 = vadd.f32 %v557, %v558
        %v560 = vrot.slane %v559, 1
        %v561 = vadd.f32 %v559, %v560
        %v562 = vrcp.pop %v548
        %v563 = vrcp.pop %v561
        %v564 = vld [vmem:[%s368] sm:$0xff]
        %v565 = vld [vmem:[%s368 + $0x8] sm:$0xff]
        %v568 = vcombine.low %v564, %v565
        %v569 = vcombine.high %v564, %v565
        %v571 = vunpack.c.l.s4 1966171168
        %v572 = vunpack.c.0.s8 %v571
        %v573 = vlaneseq
        %v574 = vshrl.u32 %v573, 7
        %v575 = vsub.s32 %v572, %v574
        %v576 = vrot.slane %v568, %v575
        %v578 = vunpack.c.l.s4 1966171168
        %v579 = vunpack.c.0.s8 %v578
        %v580 = vlaneseq
        %v581 = vshrl.u32 %v580, 7
        %v582 = vsub.s32 %v579, %v581
        %v583 = vrot.slane %v569, %v582
        %v584 = vcombine.high %v576, %v576
        %v585 = vcombine.high %v583, %v583
        %v587 = vunpack.c.l.s4 1966171168
        %v588 = vunpack.c.0.s8 %v587
        %v589 = vlaneseq
        %v590 = vshrl.u32 %v589, 7
        %v591 = vsub.s32 %v588, %v590
        %v592 = vrot.slane %v576, %v591
        %v594 = vunpack.c.l.s4 1966171168
        %v595 = vunpack.c.0.s8 %v594
        %v596 = vlaneseq
        %v597 = vshrl.u32 %v596, 7
        %v598 = vsub.s32 %v595, %v597
        %v599 = vrot.slane %v583, %v598
        %v601 = vunpack.c.l.s4 1966171168
        %v602 = vunpack.c.0.s8 %v601
        %v603 = vlaneseq
        %v604 = vshrl.u32 %v603, 7
        %v605 = vsub.s32 %v602, %v604
        %v606 = vrot.slane %v584, %v605
        %v608 = vunpack.c.l.s4 1966171168
        %v609 = vunpack.c.0.s8 %v608
        %v610 = vlaneseq
        %v611 = vshrl.u32 %v610, 7
        %v612 = vsub.s32 %v609, %v611
        %v613 = vrot.slane %v585, %v612
        %v614 = vcombine.high %v592, %v592
        %v615 = vcombine.high %v599, %v599
        %v616 = vcombine.high %v606, %v606
        %v617 = vcombine.high %v613, %v613
        %v618 = vlaneseq
        %v619 = vshrl.u32 %v618, 7
        %v620 = vsub.s32 0, %v619
        %v621 = vrot.slane %v592, %v620
        %v622 = vlaneseq
        %v623 = vshrl.u32 %v622, 7
        %v624 = vsub.s32 1, %v623
        %v625 = vrot.slane %v592, %v624
        %v626 = vlaneseq
        %v627 = vshrl.u32 %v626, 7
        %v628 = vsub.s32 0, %v627
        %v629 = vrot.slane %v606, %v628
        %v630 = vlaneseq
        %v631 = vshrl.u32 %v630, 7
        %v632 = vsub.s32 1, %v631
        %v633 = vrot.slane %v606, %v632
        %v634 = vlaneseq
        %v635 = vshrl.u32 %v634, 7
        %v636 = vsub.s32 0, %v635
        %v637 = vrot.slane %v614, %v636
        %v638 = vlaneseq
        %v639 = vshrl.u32 %v638, 7
        %v640 = vsub.s32 1, %v639
        %v641 = vrot.slane %v614, %v640
        %v642 = vlaneseq
        %v643 = vshrl.u32 %v642, 7
        %v644 = vsub.s32 0, %v643
        %v645 = vrot.slane %v616, %v644
        %v646 = vlaneseq
        %v647 = vshrl.u32 %v646, 7
        %v648 = vsub.s32 1, %v647
        %v649 = vrot.slane %v616, %v648
        %v650 = vlaneseq
        %v651 = vshrl.u32 %v650, 7
        %v652 = vsub.s32 0, %v651
        %v653 = vrot.slane %v599, %v652
        %v654 = vlaneseq
        %v655 = vshrl.u32 %v654, 7
        %v656 = vsub.s32 1, %v655
        %v657 = vrot.slane %v599, %v656
        %v658 = vlaneseq
        %v659 = vshrl.u32 %v658, 7
        %v660 = vsub.s32 0, %v659
        %v661 = vrot.slane %v613, %v660
        %v662 = vlaneseq
        %v663 = vshrl.u32 %v662, 7
        %v664 = vsub.s32 1, %v663
        %v665 = vrot.slane %v613, %v664
        %v666 = vlaneseq
        %v667 = vshrl.u32 %v666, 7
        %v668 = vsub.s32 0, %v667
        %v669 = vrot.slane %v615, %v668
        %v670 = vlaneseq
        %v671 = vshrl.u32 %v670, 7
        %v672 = vsub.s32 1, %v671
        %v673 = vrot.slane %v615, %v672
        %v674 = vlaneseq
        %v675 = vshrl.u32 %v674, 7
        %v676 = vsub.s32 0, %v675
        %v677 = vrot.slane %v617, %v676
        %v678 = vlaneseq
        %v679 = vshrl.u32 %v678, 7
        %v680 = vsub.s32 1, %v679
        %v681 = vrot.slane %v617, %v680
        %v698 = vmul.f32 %v621, %v505
        %v699 = vmul.f32 %v625, %v507
        %v700 = vmul.f32 %v621, %v509
        %v701 = vmul.f32 %v625, %v511
        %v702 = vmul.f32 %v621, %v513
        %v703 = vmul.f32 %v625, %v515
        %v704 = vmul.f32 %v621, %v517
        %v705 = vmul.f32 %v625, %v519
        %v706 = vmul.f32 %v621, %v521
        %v707 = vmul.f32 %v625, %v523
        %v708 = vmul.f32 %v621, %v525
        %v709 = vmul.f32 %v625, %v527
        %v710 = vmul.f32 %v621, %v529
        %v711 = vmul.f32 %v625, %v531
        %v712 = vmul.f32 %v621, %v533
        %v713 = vmul.f32 %v625, %v535
        %v714 = vmul.f32 %v629, %v505
        %v715 = vmul.f32 %v633, %v507
        %v716 = vmul.f32 %v629, %v509
        %v717 = vmul.f32 %v633, %v511
        %v718 = vmul.f32 %v629, %v513
        %v719 = vmul.f32 %v633, %v515
        %v720 = vmul.f32 %v629, %v517
        %v721 = vmul.f32 %v633, %v519
        %v722 = vmul.f32 %v629, %v521
        %v723 = vmul.f32 %v633, %v523
        %v724 = vmul.f32 %v629, %v525
        %v725 = vmul.f32 %v633, %v527
        %v726 = vmul.f32 %v629, %v529
        %v727 = vmul.f32 %v633, %v531
        %v728 = vmul.f32 %v629, %v533
        %v729 = vmul.f32 %v633, %v535
        %v730 = vmul.f32 %v637, %v505
        %v731 = vmul.f32 %v641, %v507
        %v732 = vmul.f32 %v637, %v509
        %v733 = vmul.f32 %v641, %v511
        %v734 = vmul.f32 %v637, %v513
        %v735 = vmul.f32 %v641, %v515
        %v736 = vmul.f32 %v637, %v517
        %v737 = vmul.f32 %v641, %v519
        %v738 = vmul.f32 %v637, %v521
        %v739 = vmul.f32 %v641, %v523
        %v740 = vmul.f32 %v637, %v525
        %v741 = vmul.f32 %v641, %v527
        %v742 = vmul.f32 %v637, %v529
        %v743 = vmul.f32 %v641, %v531
        %v744 = vmul.f32 %v637, %v533
        %v745 = vmul.f32 %v641, %v535
        %v746 = vmul.f32 %v645, %v505
        %v747 = vmul.f32 %v649, %v507
        %v748 = vmul.f32 %v645, %v509
        %v749 = vmul.f32 %v649, %v511
        %v750 = vmul.f32 %v645, %v513
        %v751 = vmul.f32 %v649, %v515
        %v752 = vmul.f32 %v645, %v517
        %v753 = vmul.f32 %v649, %v519
        %v754 = vmul.f32 %v645, %v521
        %v755 = vmul.f32 %v649, %v523
        %v756 = vmul.f32 %v645, %v525
        %v757 = vmul.f32 %v649, %v527
        %v758 = vmul.f32 %v645, %v529
        %v759 = vmul.f32 %v649, %v531
        %v760 = vmul.f32 %v645, %v533
        %v761 = vmul.f32 %v649, %v535
        %v762 = vmul.f32 %v653, %v505
        %v763 = vmul.f32 %v657, %v507
        %v764 = vmul.f32 %v653, %v509
        %v765 = vmul.f32 %v657, %v511
        %v766 = vmul.f32 %v653, %v513
        %v767 = vmul.f32 %v657, %v515
        %v768 = vmul.f32 %v653, %v517
        %v769 = vmul.f32 %v657, %v519
        %v770 = vmul.f32 %v653, %v521
        %v771 = vmul.f32 %v657, %v523
        %v772 = vmul.f32 %v653, %v525
        %v773 = vmul.f32 %v657, %v527
        %v774 = vmul.f32 %v653, %v529
        %v775 = vmul.f32 %v657, %v531
        %v776 = vmul.f32 %v653, %v533
        %v777 = vmul.f32 %v657, %v535
        %v778 = vmul.f32 %v661, %v505
        %v779 = vmul.f32 %v665, %v507
        %v780 = vmul.f32 %v661, %v509
        %v781 = vmul.f32 %v665, %v511
        %v782 = vmul.f32 %v661, %v513
        %v783 = vmul.f32 %v665, %v515
        %v784 = vmul.f32 %v661, %v517
        %v785 = vmul.f32 %v665, %v519
        %v786 = vmul.f32 %v661, %v521
        %v787 = vmul.f32 %v665, %v523
        %v788 = vmul.f32 %v661, %v525
        %v789 = vmul.f32 %v665, %v527
        %v790 = vmul.f32 %v661, %v529
        %v791 = vmul.f32 %v665, %v531
        %v792 = vmul.f32 %v661, %v533
        %v793 = vmul.f32 %v665, %v535
        %v794 = vmul.f32 %v669, %v505
        %v795 = vmul.f32 %v673, %v507
        %v796 = vmul.f32 %v669, %v509
        %v797 = vmul.f32 %v673, %v511
        %v798 = vmul.f32 %v669, %v513
        %v799 = vmul.f32 %v673, %v515
        %v800 = vmul.f32 %v669, %v517
        %v801 = vmul.f32 %v673, %v519
        %v802 = vmul.f32 %v669, %v521
        %v803 = vmul.f32 %v673, %v523
        %v804 = vmul.f32 %v669, %v525
        %v805 = vmul.f32 %v673, %v527
        %v806 = vmul.f32 %v669, %v529
        %v807 = vmul.f32 %v673, %v531
        %v808 = vmul.f32 %v669, %v533
        %v809 = vmul.f32 %v673, %v535
        %v810 = vmul.f32 %v677, %v505
        %v811 = vmul.f32 %v681, %v507
        %v812 = vmul.f32 %v677, %v509
        %v813 = vmul.f32 %v681, %v511
        %v814 = vmul.f32 %v677, %v513
        %v815 = vmul.f32 %v681, %v515
        %v816 = vmul.f32 %v677, %v517
        %v817 = vmul.f32 %v681, %v519
        %v818 = vmul.f32 %v677, %v521
        %v819 = vmul.f32 %v681, %v523
        %v820 = vmul.f32 %v677, %v525
        %v821 = vmul.f32 %v681, %v527
        %v822 = vmul.f32 %v677, %v529
        %v823 = vmul.f32 %v681, %v531
        %v824 = vmul.f32 %v677, %v533
        %v825 = vmul.f32 %v681, %v535
        %v826 = vpack.c.bf16 %v700, %v698
        %v827 = vpack.c.bf16 %v701, %v699
        %v828 = vpack.c.bf16 %v704, %v702
        %v829 = vpack.c.bf16 %v705, %v703
        %v830 = vpack.c.bf16 %v708, %v706
        %v831 = vpack.c.bf16 %v709, %v707
        %v832 = vpack.c.bf16 %v712, %v710
        %v833 = vpack.c.bf16 %v713, %v711
        %v834 = vpack.c.bf16 %v716, %v714
        %v835 = vpack.c.bf16 %v717, %v715
        %v836 = vpack.c.bf16 %v720, %v718
        %v837 = vpack.c.bf16 %v721, %v719
        %v838 = vpack.c.bf16 %v724, %v722
        %v839 = vpack.c.bf16 %v725, %v723
        %v840 = vpack.c.bf16 %v728, %v726
        %v841 = vpack.c.bf16 %v729, %v727
        %v842 = vpack.c.bf16 %v732, %v730
        %v843 = vpack.c.bf16 %v733, %v731
        %v844 = vpack.c.bf16 %v736, %v734
        %v845 = vpack.c.bf16 %v737, %v735
        %v846 = vpack.c.bf16 %v740, %v738
        %v847 = vpack.c.bf16 %v741, %v739
        %v848 = vpack.c.bf16 %v744, %v742
        %v849 = vpack.c.bf16 %v745, %v743
        %v850 = vpack.c.bf16 %v748, %v746
        %v851 = vpack.c.bf16 %v749, %v747
        %v852 = vpack.c.bf16 %v752, %v750
        %v853 = vpack.c.bf16 %v753, %v751
        %v854 = vpack.c.bf16 %v756, %v754
        %v855 = vpack.c.bf16 %v757, %v755
        %v856 = vpack.c.bf16 %v760, %v758
        %v857 = vpack.c.bf16 %v761, %v759
        %v858 = vpack.c.bf16 %v764, %v762
        %v859 = vpack.c.bf16 %v765, %v763
        %v860 = vpack.c.bf16 %v768, %v766
        %v861 = vpack.c.bf16 %v769, %v767
        %v862 = vpack.c.bf16 %v772, %v770
        %v863 = vpack.c.bf16 %v773, %v771
        %v864 = vpack.c.bf16 %v776, %v774
        %v865 = vpack.c.bf16 %v777, %v775
        %v866 = vpack.c.bf16 %v780, %v778
        %v867 = vpack.c.bf16 %v781, %v779
        %v868 = vpack.c.bf16 %v784, %v782
        %v869 = vpack.c.bf16 %v785, %v783
        %v870 = vpack.c.bf16 %v788, %v786
        %v871 = vpack.c.bf16 %v789, %v787
        %v872 = vpack.c.bf16 %v792, %v790
        %v873 = vpack.c.bf16 %v793, %v791
        %v874 = vpack.c.bf16 %v796, %v794
        %v875 = vpack.c.bf16 %v797, %v795
        %v876 = vpack.c.bf16 %v800, %v798
        %v877 = vpack.c.bf16 %v801, %v799
        %v878 = vpack.c.bf16 %v804, %v802
        %v879 = vpack.c.bf16 %v805, %v803
        %v880 = vpack.c.bf16 %v808, %v806
        %v881 = vpack.c.bf16 %v809, %v807
        %v882 = vpack.c.bf16 %v812, %v810
        %v883 = vpack.c.bf16 %v813, %v811
        %v884 = vpack.c.bf16 %v816, %v814
        %v885 = vpack.c.bf16 %v817, %v815
        %v886 = vpack.c.bf16 %v820, %v818
        %v887 = vpack.c.bf16 %v821, %v819
        %v888 = vpack.c.bf16 %v824, %v822
        %v889 = vpack.c.bf16 %v825, %v823
        %v890 = vld [vmem:[#allocation2] sm:$0xf]
        %v893 = vunpack.c.l.s4 1966171168
        %v894 = vunpack.c.0.s8 %v893
        %v895 = vlaneseq
        %v896 = vshrl.u32 %v895, 7
        %v897 = vsub.s32 %v894, %v896
        %v898 = vrot.slane %v890, %v897
        %v899 = vcombine.high %v898, %v898
        %v901 = vunpack.c.l.s4 1966171168
        %v902 = vunpack.c.0.s8 %v901
        %v903 = vlaneseq
        %v904 = vshrl.u32 %v903, 7
        %v905 = vsub.s32 %v902, %v904
        %v906 = vrot.slane %v898, %v905
        %v908 = vunpack.c.l.s4 1966171168
        %v909 = vunpack.c.0.s8 %v908
        %v910 = vlaneseq
        %v911 = vshrl.u32 %v910, 7
        %v912 = vsub.s32 %v909, %v911
        %v913 = vrot.slane %v899, %v912
        %v914 = vcombine.high %v906, %v906
        %v915 = vcombine.high %v913, %v913
        %920 = vmatprep.subr.bf16.mxu0 %v827
        %921 = vmatpush1.bf16.msra.mxu0 %v826
        %922 = vmatprep.subr.bf16.mxu0 %v829
        %923 = vmatpush1.bf16.msra.mxu0 %v828
        %924 = vmatprep.subr.bf16.mxu0 %v831
        %925 = vmatpush1.bf16.msra.mxu0 %v830
        %926 = vmatprep.subr.bf16.mxu0 %v833
        %927 = vmatpush1.bf16.msra.mxu0 %v832
        %928 = vmatprep.subr.bf16.mxu0 %v835
        %929 = vmatpush1.bf16.msra.mxu0 %v834
        %930 = vmatprep.subr.bf16.mxu0 %v837
        %931 = vmatpush1.bf16.msra.mxu0 %v836
        %932 = vmatprep.subr.bf16.mxu0 %v839
        %933 = vmatpush1.bf16.msra.mxu0 %v838
        %934 = vmatprep.subr.bf16.mxu0 %v841
        %935 = vmatpush1.bf16.msra.mxu0 %v840
        %936 = vmatprep.subr.bf16.mxu0 %v843
        %937 = vmatpush1.bf16.msra.mxu0 %v842
        %938 = vmatprep.subr.bf16.mxu0 %v845
        %939 = vmatpush1.bf16.msra.mxu0 %v844
        %940 = vmatprep.subr.bf16.mxu0 %v847
        %941 = vmatpush1.bf16.msra.mxu0 %v846
        %942 = vmatprep.subr.bf16.mxu0 %v849
        %943 = vmatpush1.bf16.msra.mxu0 %v848
        %944 = vmatprep.subr.bf16.mxu0 %v851
        %945 = vmatpush1.bf16.msra.mxu0 %v850
        %946 = vmatprep.subr.bf16.mxu0 %v853
        %947 = vmatpush1.bf16.msra.mxu0 %v852
        %948 = vmatprep.subr.bf16.mxu0 %v855
        %949 = vmatpush1.bf16.msra.mxu0 %v854
        %950 = vmatprep.subr.bf16.mxu0 %v857
        %951 = vmatpush1.bf16.msra.mxu0 %v856
        %952 = vmatprep.mubr.bf16.mxu0 %v913
        %953 = vmatmul.mubr.bf16.gmra.mrb[0].mxu0 %v906
        %v954 = vpop.f32.mrb[0].mxu0
        %v955 = vadd.f32 0.0, %v954
        %v956 = vpop.f32.mrb[0].mxu0
        %v957 = vadd.f32 0.0, %v956
        %v958 = vpop.f32.mrb[0].mxu0
        %v959 = vpop.f32.mrb[0].mxu0
        %960 = vdwg.mxu0
        %961 = vmatprep.subr.bf16.mxu0 %v859
        %962 = vmatpush1.bf16.msra.mxu0 %v858
        %963 = vmatprep.subr.bf16.mxu0 %v861
        %964 = vmatpush1.bf16.msra.mxu0 %v860
        %965 = vmatprep.subr.bf16.mxu0 %v863
        %966 = vmatpush1.bf16.msra.mxu0 %v862
        %967 = vmatprep.subr.bf16.mxu0 %v865
        %968 = vmatpush1.bf16.msra.mxu0 %v864
        %969 = vmatprep.subr.bf16.mxu0 %v867
        %970 = vmatpush1.bf16.msra.mxu0 %v866
        %971 = vmatprep.subr.bf16.mxu0 %v869
        %972 = vmatpush1.bf16.msra.mxu0 %v868
        %973 = vmatprep.subr.bf16.mxu0 %v871
        %974 = vmatpush1.bf16.msra.mxu0 %v870
        %975 = vmatprep.subr.bf16.mxu0 %v873
        %976 = vmatpush1.bf16.msra.mxu0 %v872
        %977 = vmatprep.subr.bf16.mxu0 %v875
        %978 = vmatpush1.bf16.msra.mxu0 %v874
        %979 = vmatprep.subr.bf16.mxu0 %v877
        %980 = vmatpush1.bf16.msra.mxu0 %v876
        %981 = vmatprep.subr.bf16.mxu0 %v879
        %982 = vmatpush1.bf16.msra.mxu0 %v878
        %983 = vmatprep.subr.bf16.mxu0 %v881
        %984 = vmatpush1.bf16.msra.mxu0 %v880
        %985 = vmatprep.subr.bf16.mxu0 %v883
        %986 = vmatpush1.bf16.msra.mxu0 %v882
        %987 = vmatprep.subr.bf16.mxu0 %v885
        %988 = vmatpush1.bf16.msra.mxu0 %v884
        %989 = vmatprep.subr.bf16.mxu0 %v887
        %990 = vmatpush1.bf16.msra.mxu0 %v886
        %991 = vmatprep.subr.bf16.mxu0 %v889
        %992 = vmatpush1.bf16.msra.mxu0 %v888
        %993 = vmatprep.mubr.bf16.mxu0 %v915
        %994 = vmatmul.mubr.bf16.gmra.mrb[0].mxu0 %v914
        %v995 = vpop.f32.mrb[0].mxu0
        %v996 = vadd.f32 %v955, %v995
        %v997 = vpop.f32.mrb[0].mxu0
        %v998 = vadd.f32 %v957, %v997
        %v999 = vpop.f32.mrb[0].mxu0
        %v1000 = vpop.f32.mrb[0].mxu0
        %1001 = vdwg.mxu0
        %v1002 = vmul.f32 %v996, %v562
        %v1003 = vmul.f32 %v998, %v563
        %v1004 = vadd.f32 %v1002, 0.0
        %v1005 = vadd.f32 %v1003, 0.0
        %v1006 = vld [vmem:[%s377] sm:$0xff]
        %v1007 = vld [vmem:[%s377 + $0x8] sm:$0xff]
        %v1008 = vld [vmem:[%s377 + $0x10] sm:$0xff]
        %v1009 = vld [vmem:[%s377 + $0x18] sm:$0xff]
        %v1010 = vmax.f32 %v1006, %v1008
        %v1011 = vrot.slane %v1010, 4
        %v1012 = vmax.f32 %v1010, %v1011
        %v1013 = vrot.slane %v1012, 2
        %v1014 = vmax.f32 %v1012, %v1013
        %v1015 = vrot.slane %v1014, 1
        %v1016 = vmax.f32 %v1014, %v1015
        %v1017 = vmax.f32 %v1007, %v1009
        %v1018 = vrot.slane %v1017, 4
        %v1019 = vmax.f32 %v1017, %v1018
        %v1020 = vrot.slane %v1019, 2
        %v1021 = vmax.f32 %v1019, %v1020
        %v1022 = vrot.slane %v1021, 1
        %v1023 = vmax.f32 %v1021, %v1022
        %v1024 = vsub.f32 %v1006, %v1016
        %v1025 = vsub.f32 %v1007, %v1023
        %v1026 = vsub.f32 %v1008, %v1016
        %v1027 = vsub.f32 %v1009, %v1023
        %v1028 = vmul.f32 %v1024, 1.442695
        %v1029 = vpow.pop %v1028
        %v1030 = vmul.f32 %v1025, 1.442695
        %v1031 = vpow.pop %v1030
        %v1032 = vmul.f32 %v1026, 1.442695
        %v1033 = vpow.pop %v1032
        %v1034 = vmul.f32 %v1027, 1.442695
        %v1035 = vpow.pop %v1034
        %v1036 = vadd.f32 %v1029, %v1033
        %v1037 = vrot.slane %v1036, 4
        %v1038 = vadd.f32 %v1036, %v1037
        %v1039 = vrot.slane %v1038, 2
        %v1040 = vadd.f32 %v1038, %v1039
        %v1041 = vrot.slane %v1040, 1
        %v1042 = vadd.f32 %v1040, %v1041
        %v1043 = vadd.f32 %v1031, %v1035
        %v1044 = vrot.slane %v1043, 4
        %v1045 = vadd.f32 %v1043, %v1044
        %v1046 = vrot.slane %v1045, 2
        %v1047 = vadd.f32 %v1045, %v1046
        %v1048 = vrot.slane %v1047, 1
        %v1049 = vadd.f32 %v1047, %v1048
        %v1050 = vrcp.pop %v1042
        %v1051 = vrcp.pop %v1049
        %v1052 = vld [vmem:[%s386] sm:$0xff]
        %v1053 = vld [vmem:[%s386 + $0x8] sm:$0xff]
        %v1054 = vld [vmem:[%s386 + $0x10] sm:$0xff]
        %v1055 = vld [vmem:[%s386 + $0x18] sm:$0xff]
        %v1060 = vcombine.low %v1052, %v1053
        %v1061 = vcombine.high %v1052, %v1053
        %v1063 = vunpack.c.l.s4 1966171168
        %v1064 = vunpack.c.0.s8 %v1063
        %v1065 = vlaneseq
        %v1066 = vshrl.u32 %v1065, 7
        %v1067 = vsub.s32 %v1064, %v1066
        %v1068 = vrot.slane %v1060, %v1067
        %v1070 = vunpack.c.l.s4 1966171168
        %v1071 = vunpack.c.0.s8 %v1070
        %v1072 = vlaneseq
        %v1073 = vshrl.u32 %v1072, 7
        %v1074 = vsub.s32 %v1071, %v1073
        %v1075 = vrot.slane %v1061, %v1074
        %v1076 = vcombine.high %v1068, %v1068
        %v1077 = vcombine.high %v1075, %v1075
        %v1079 = vunpack.c.l.s4 1966171168
        %v1080 = vunpack.c.0.s8 %v1079
        %v1081 = vlaneseq
        %v1082 = vshrl.u32 %v1081, 7
        %v1083 = vsub.s32 %v1080, %v1082
        %v1084 = vrot.slane %v1068, %v1083
        %v1086 = vunpack.c.l.s4 1966171168
        %v1087 = vunpack.c.0.s8 %v1086
        %v1088 = vlaneseq
        %v1089 = vshrl.u32 %v1088, 7
        %v1090 = vsub.s32 %v1087, %v1089
        %v1091 = vrot.slane %v1075, %v1090
        %v1093 = vunpack.c.l.s4 1966171168
        %v1094 = vunpack.c.0.s8 %v1093
        %v1095 = vlaneseq
        %v1096 = vshrl.u32 %v1095, 7
        %v1097 = vsub.s32 %v1094, %v1096
        %v1098 = vrot.slane %v1076, %v1097
        %v1100 = vunpack.c.l.s4 1966171168
        %v1101 = vunpack.c.0.s8 %v1100
        %v1102 = vlaneseq
        %v1103 = vshrl.u32 %v1102, 7
        %v1104 = vsub.s32 %v1101, %v1103
        %v1105 = vrot.slane %v1077, %v1104
        %v1106 = vcombine.high %v1084, %v1084
        %v1107 = vcombine.high %v1091, %v1091
        %v1108 = vcombine.high %v1098, %v1098
        %v1109 = vcombine.high %v1105, %v1105
        %v1110 = vcombine.low %v1054, %v1055
        %v1111 = vcombine.high %v1054, %v1055
        %v1113 = vunpack.c.l.s4 1966171168
        %v1114 = vunpack.c.0.s8 %v1113
        %v1115 = vlaneseq
        %v1116 = vshrl.u32 %v1115, 7
        %v1117 = vsub.s32 %v1114, %v1116
        %v1118 = vrot.slane %v1110, %v1117
        %v1120 = vunpack.c.l.s4 1966171168
        %v1121 = vunpack.c.0.s8 %v1120
        %v1122 = vlaneseq
        %v1123 = vshrl.u32 %v1122, 7
        %v1124 = vsub.s32 %v1121, %v1123
        %v1125 = vrot.slane %v1111, %v1124
        %v1126 = vcombine.high %v1118, %v1118
        %v1127 = vcombine.high %v1125, %v1125
        %v1129 = vunpack.c.l.s4 1966171168
        %v1130 = vunpack.c.0.s8 %v1129
        %v1131 = vlaneseq
        %v1132 = vshrl.u32 %v1131, 7
        %v1133 = vsub.s32 %v1130, %v1132
        %v1134 = vrot.slane %v1118, %v1133
        %v1136 = vunpack.c.l.s4 1966171168
        %v1137 = vunpack.c.0.s8 %v1136
        %v1138 = vlaneseq
        %v1139 = vshrl.u32 %v1138, 7
        %v1140 = vsub.s32 %v1137, %v1139
        %v1141 = vrot.slane %v1125, %v1140
        %v1143 = vunpack.c.l.s4 1966171168
        %v1144 = vunpack.c.0.s8 %v1143
        %v1145 = vlaneseq
        %v1146 = vshrl.u32 %v1145, 7
        %v1147 = vsub.s32 %v1144, %v1146
        %v1148 = vrot.slane %v1126, %v1147
        %v1150 = vunpack.c.l.s4 1966171168
        %v1151 = vunpack.c.0.s8 %v1150
        %v1152 = vlaneseq
        %v1153 = vshrl.u32 %v1152, 7
        %v1154 = vsub.s32 %v1151, %v1153
        %v1155 = vrot.slane %v1127, %v1154
        %v1156 = vcombine.high %v1134, %v1134
        %v1157 = vcombine.high %v1141, %v1141
        %v1158 = vcombine.high %v1148, %v1148
        %v1159 = vcombine.high %v1155, %v1155
        %v1160 = vlaneseq
        %v1161 = vshrl.u32 %v1160, 7
        %v1162 = vsub.s32 0, %v1161
        %v1163 = vrot.slane %v1084, %v1162
        %v1164 = vlaneseq
        %v1165 = vshrl.u32 %v1164, 7
        %v1166 = vsub.s32 1, %v1165
        %v1167 = vrot.slane %v1084, %v1166
        %v1168 = vlaneseq
        %v1169 = vshrl.u32 %v1168, 7
        %v1170 = vsub.s32 0, %v1169
        %v1171 = vrot.slane %v1098, %v1170
        %v1172 = vlaneseq
        %v1173 = vshrl.u32 %v1172, 7
        %v1174 = vsub.s32 1, %v1173
        %v1175 = vrot.slane %v1098, %v1174
        %v1176 = vlaneseq
        %v1177 = vshrl.u32 %v1176, 7
        %v1178 = vsub.s32 0, %v1177
        %v1179 = vrot.slane %v1106, %v1178
        %v1180 = vlaneseq
        %v1181 = vshrl.u32 %v1180, 7
        %v1182 = vsub.s32 1, %v1181
        %v1183 = vrot.slane %v1106, %v1182
        %v1184 = vlaneseq
        %v1185 = vshrl.u32 %v1184, 7
        %v1186 = vsub.s32 0, %v1185
        %v1187 = vrot.slane %v1108, %v1186
        %v1188 = vlaneseq
        %v1189 = vshrl.u32 %v1188, 7
        %v1190 = vsub.s32 1, %v1189
        %v1191 = vrot.slane %v1108, %v1190
        %v1192 = vlaneseq
        %v1193 = vshrl.u32 %v1192, 7
        %v1194 = vsub.s32 0, %v1193
        %v1195 = vrot.slane %v1091, %v1194
        %v1196 = vlaneseq
        %v1197 = vshrl.u32 %v1196, 7
        %v1198 = vsub.s32 1, %v1197
        %v1199 = vrot.slane %v1091, %v1198
        %v1200 = vlaneseq
        %v1201 = vshrl.u32 %v1200, 7
        %v1202 = vsub.s32 0, %v1201
        %v1203 = vrot.slane %v1105, %v1202
        %v1204 = vlaneseq
        %v1205 = vshrl.u32 %v1204, 7
        %v1206 = vsub.s32 1, %v1205
        %v1207 = vrot.slane %v1105, %v1206
        %v1208 = vlaneseq
        %v1209 = vshrl.u32 %v1208, 7
        %v1210 = vsub.s32 0, %v1209
        %v1211 = vrot.slane %v1107, %v1210
        %v1212 = vlaneseq
        %v1213 = vshrl.u32 %v1212, 7
        %v1214 = vsub.s32 1, %v1213
        %v1215 = vrot.slane %v1107, %v1214
        %v1216 = vlaneseq
        %v1217 = vshrl.u32 %v1216, 7
        %v1218 = vsub.s32 0, %v1217
        %v1219 = vrot.slane %v1109, %v1218
        %v1220 = vlaneseq
        %v1221 = vshrl.u32 %v1220, 7
        %v1222 = vsub.s32 1, %v1221
        %v1223 = vrot.slane %v1109, %v1222
        %v1224 = vlaneseq
        %v1225 = vshrl.u32 %v1224, 7
        %v1226 = vsub.s32 0, %v1225
        %v1227 = vrot.slane %v1134, %v1226
        %v1228 = vlaneseq
        %v1229 = vshrl.u32 %v1228, 7
        %v1230 = vsub.s32 1, %v1229
        %v1231 = vrot.slane %v1134, %v1230
        %v1232 = vlaneseq
        %v1233 = vshrl.u32 %v1232, 7
        %v1234 = vsub.s32 0, %v1233
        %v1235 = vrot.slane %v1148, %v1234
        %v1236 = vlaneseq
        %v1237 = vshrl.u32 %v1236, 7
        %v1238 = vsub.s32 1, %v1237
        %v1239 = vrot.slane %v1148, %v1238
        %v1240 = vlaneseq
        %v1241 = vshrl.u32 %v1240, 7
        %v1242 = vsub.s32 0, %v1241
        %v1243 = vrot.slane %v1156, %v1242
        %v1244 = vlaneseq
        %v1245 = vshrl.u32 %v1244, 7
        %v1246 = vsub.s32 1, %v1245
        %v1247 = vrot.slane %v1156, %v1246
        %v1248 = vlaneseq
        %v1249 = vshrl.u32 %v1248, 7
        %v1250 = vsub.s32 0, %v1249
        %v1251 = vrot.slane %v1158, %v1250
        %v1252 = vlaneseq
        %v1253 = vshrl.u32 %v1252, 7
        %v1254 = vsub.s32 1, %v1253
        %v1255 = vrot.slane %v1158, %v1254
        %v1256 = vlaneseq
        %v1257 = vshrl.u32 %v1256, 7
        %v1258 = vsub.s32 0, %v1257
        %v1259 = vrot.slane %v1141, %v1258
        %v1260 = vlaneseq
        %v1261 = vshrl.u32 %v1260, 7
        %v1262 = vsub.s32 1, %v1261
        %v1263 = vrot.slane %v1141, %v1262
        %v1264 = vlaneseq
        %v1265 = vshrl.u32 %v1264, 7
        %v1266 = vsub.s32 0, %v1265
        %v1267 = vrot.slane %v1155, %v1266
        %v1268 = vlaneseq
        %v1269 = vshrl.u32 %v1268, 7
        %v1270 = vsub.s32 1, %v1269
        %v1271 = vrot.slane %v1155, %v1270
        %v1272 = vlaneseq
        %v1273 = vshrl.u32 %v1272, 7
        %v1274 = vsub.s32 0, %v1273
        %v1275 = vrot.slane %v1157, %v1274
        %v1276 = vlaneseq
        %v1277 = vshrl.u32 %v1276, 7
        %v1278 = vsub.s32 1, %v1277
        %v1279 = vrot.slane %v1157, %v1278
        %v1280 = vlaneseq
        %v1281 = vshrl.u32 %v1280, 7
        %v1282 = vsub.s32 0, %v1281
        %v1283 = vrot.slane %v1159, %v1282
        %v1284 = vlaneseq
        %v1285 = vshrl.u32 %v1284, 7
        %v1286 = vsub.s32 1, %v1285
        %v1287 = vrot.slane %v1159, %v1286
        %v1320 = vmul.f32 %v1163, %v1029
        %v1321 = vmul.f32 %v1167, %v1031
        %v1322 = vmul.f32 %v1163, %v1033
        %v1323 = vmul.f32 %v1167, %v1035
        %v1324 = vmul.f32 %v1171, %v1029
        %v1325 = vmul.f32 %v1175, %v1031
        %v1326 = vmul.f32 %v1171, %v1033
        %v1327 = vmul.f32 %v1175, %v1035
        %v1328 = vmul.f32 %v1179, %v1029
        %v1329 = vmul.f32 %v1183, %v1031
        %v1330 = vmul.f32 %v1179, %v1033
        %v1331 = vmul.f32 %v1183, %v1035
        %v1332 = vmul.f32 %v1187, %v1029
        %v1333 = vmul.f32 %v1191, %v1031
        %v1334 = vmul.f32 %v1187, %v1033
        %v1335 = vmul.f32 %v1191, %v1035
        %v1336 = vmul.f32 %v1195, %v1029
        %v1337 = vmul.f32 %v1199, %v1031
        %v1338 = vmul.f32 %v1195, %v1033
        %v1339 = vmul.f32 %v1199, %v1035
        %v1340 = vmul.f32 %v1203, %v1029
        %v1341 = vmul.f32 %v1207, %v1031
        %v1342 = vmul.f32 %v1203, %v1033
        %v1343 = vmul.f32 %v1207, %v1035
        %v1344 = vmul.f32 %v1211, %v1029
        %v1345 = vmul.f32 %v1215, %v1031
        %v1346 = vmul.f32 %v1211, %v1033
        %v1347 = vmul.f32 %v1215, %v1035
        %v1348 = vmul.f32 %v1219, %v1029
        %v1349 = vmul.f32 %v1223, %v1031
        %v1350 = vmul.f32 %v1219, %v1033
        %v1351 = vmul.f32 %v1223, %v1035
        %v1352 = vmul.f32 %v1227, %v1029
        %v1353 = vmul.f32 %v1231, %v1031
        %v1354 = vmul.f32 %v1227, %v1033
        %v1355 = vmul.f32 %v1231, %v1035
        %v1356 = vmul.f32 %v1235, %v1029
        %v1357 = vmul.f32 %v1239, %v1031
        %v1358 = vmul.f32 %v1235, %v1033
        %v1359 = vmul.f32 %v1239, %v1035
        %v1360 = vmul.f32 %v1243, %v1029
        %v1361 = vmul.f32 %v1247, %v1031
        %v1362 = vmul.f32 %v1243, %v1033
        %v1363 = vmul.f32 %v1247, %v1035
        %v1364 = vmul.f32 %v1251, %v1029
        %v1365 = vmul.f32 %v1255, %v1031
        %v1366 = vmul.f32 %v1251, %v1033
        %v1367 = vmul.f32 %v1255, %v1035
        %v1368 = vmul.f32 %v1259, %v1029
        %v1369 = vmul.f32 %v1263, %v1031
        %v1370 = vmul.f32 %v1259, %v1033
        %v1371 = vmul.f32 %v1263, %v1035
        %v1372 = vmul.f32 %v1267, %v1029
        %v1373 = vmul.f32 %v1271, %v1031
        %v1374 = vmul.f32 %v1267, %v1033
        %v1375 = vmul.f32 %v1271, %v1035
        %v1376 = vmul.f32 %v1275, %v1029
        %v1377 = vmul.f32 %v1279, %v1031
        %v1378 = vmul.f32 %v1275, %v1033
        %v1379 = vmul.f32 %v1279, %v1035
        %v1380 = vmul.f32 %v1283, %v1029
        %v1381 = vmul.f32 %v1287, %v1031
        %v1382 = vmul.f32 %v1283, %v1033
        %v1383 = vmul.f32 %v1287, %v1035
        %v1384 = vpack.c.bf16 %v1322, %v1320
        %v1385 = vpack.c.bf16 %v1323, %v1321
        %v1386 = vpack.c.bf16 %v1326, %v1324
        %v1387 = vpack.c.bf16 %v1327, %v1325
        %v1388 = vpack.c.bf16 %v1330, %v1328
        %v1389 = vpack.c.bf16 %v1331, %v1329
        %v1390 = vpack.c.bf16 %v1334, %v1332
        %v1391 = vpack.c.bf16 %v1335, %v1333
        %v1392 = vpack.c.bf16 %v1338, %v1336
        %v1393 = vpack.c.bf16 %v1339, %v1337
        %v1394 = vpack.c.bf16 %v1342, %v1340
        %v1395 = vpack.c.bf16 %v1343, %v1341
        %v1396 = vpack.c.bf16 %v1346, %v1344
        %v1397 = vpack.c.bf16 %v1347, %v1345
        %v1398 = vpack.c.bf16 %v1350, %v1348
        %v1399 = vpack.c.bf16 %v1351, %v1349
        %v1400 = vpack.c.bf16 %v1354, %v1352
        %v1401 = vpack.c.bf16 %v1355, %v1353
        %v1402 = vpack.c.bf16 %v1358, %v1356
        %v1403 = vpack.c.bf16 %v1359, %v1357
        %v1404 = vpack.c.bf16 %v1362, %v1360
        %v1405 = vpack.c.bf16 %v1363, %v1361
        %v1406 = vpack.c.bf16 %v1366, %v1364
        %v1407 = vpack.c.bf16 %v1367, %v1365
        %v1408 = vpack.c.bf16 %v1370, %v1368
        %v1409 = vpack.c.bf16 %v1371, %v1369
        %v1410 = vpack.c.bf16 %v1374, %v1372
        %v1411 = vpack.c.bf16 %v1375, %v1373
        %v1412 = vpack.c.bf16 %v1378, %v1376
        %v1413 = vpack.c.bf16 %v1379, %v1377
        %v1414 = vpack.c.bf16 %v1382, %v1380
        %v1415 = vpack.c.bf16 %v1383, %v1381
        %v1416 = vld [vmem:[%s3] sm:$0x3]
        %v1419 = vunpack.c.l.s4 1966171168
        %v1420 = vunpack.c.0.s8 %v1419
        %v1421 = vlaneseq
        %v1422 = vshrl.u32 %v1421, 7
        %v1423 = vsub.s32 %v1420, %v1422
        %v1424 = vrot.slane %v1416, %v1423
        %v1425 = vcombine.high %v1424, %v1424
        %v1427 = vunpack.c.l.s4 1966171168
        %v1428 = vunpack.c.0.s8 %v1427
        %v1429 = vlaneseq
        %v1430 = vshrl.u32 %v1429, 7
        %v1431 = vsub.s32 %v1428, %v1430
        %v1432 = vrot.slane %v1424, %v1431
        %v1434 = vunpack.c.l.s4 1966171168
        %v1435 = vunpack.c.0.s8 %v1434
        %v1436 = vlaneseq
        %v1437 = vshrl.u32 %v1436, 7
        %v1438 = vsub.s32 %v1435, %v1437
        %v1439 = vrot.slane %v1425, %v1438
        %1442 = vmatprep.subr.bf16.mxu0 %v1385
        %1443 = vmatpush1.bf16.msra.mxu0 %v1384
        %1444 = vmatprep.subr.bf16.mxu0 %v1387
        %1445 = vmatpush1.bf16.msra.mxu0 %v1386
        %1446 = vmatprep.subr.bf16.mxu0 %v1389
        %1447 = vmatpush1.bf16.msra.mxu0 %v1388
        %1448 = vmatprep.subr.bf16.mxu0 %v1391
        %1449 = vmatpush1.bf16.msra.mxu0 %v1390
        %1450 = vmatprep.subr.bf16.mxu0 %v1393
        %1451 = vmatpush1.bf16.msra.mxu0 %v1392
        %1452 = vmatprep.subr.bf16.mxu0 %v1395
        %1453 = vmatpush1.bf16.msra.mxu0 %v1394
        %1454 = vmatprep.subr.bf16.mxu0 %v1397
        %1455 = vmatpush1.bf16.msra.mxu0 %v1396
        %1456 = vmatprep.subr.bf16.mxu0 %v1399
        %1457 = vmatpush1.bf16.msra.mxu0 %v1398
        %1458 = vmatprep.subr.bf16.mxu0 %v1401
        %1459 = vmatpush1.bf16.msra.mxu0 %v1400
        %1460 = vmatprep.subr.bf16.mxu0 %v1403
        %1461 = vmatpush1.bf16.msra.mxu0 %v1402
        %1462 = vmatprep.subr.bf16.mxu0 %v1405
        %1463 = vmatpush1.bf16.msra.mxu0 %v1404
        %1464 = vmatprep.subr.bf16.mxu0 %v1407
        %1465 = vmatpush1.bf16.msra.mxu0 %v1406
        %1466 = vmatprep.subr.bf16.mxu0 %v1409
        %1467 = vmatpush1.bf16.msra.mxu0 %v1408
        %1468 = vmatprep.subr.bf16.mxu0 %v1411
        %1469 = vmatpush1.bf16.msra.mxu0 %v1410
        %1470 = vmatprep.subr.bf16.mxu0 %v1413
        %1471 = vmatpush1.bf16.msra.mxu0 %v1412
        %1472 = vmatprep.subr.bf16.mxu0 %v1415
        %1473 = vmatpush1.bf16.msra.mxu0 %v1414
        %1474 = vmatprep.mubr.bf16.mxu0 %v1439
        %1475 = vmatmul.mubr.bf16.gmra.mrb[0].mxu0 %v1432
        %v1476 = vpop.f32.mrb[0].mxu0
        %v1477 = vadd.f32 0.0, %v1476
        %v1478 = vpop.f32.mrb[0].mxu0
        %v1479 = vadd.f32 0.0, %v1478
        %v1480 = vpop.f32.mrb[0].mxu0
        %v1481 = vpop.f32.mrb[0].mxu0
        %1482 = vdwg.mxu0
        %v1483 = vmul.f32 %v1477, %v1050
        %v1484 = vmul.f32 %v1479, %v1051
        %v1485 = vadd.f32 %v1004, %v1483
        %v1486 = vadd.f32 %v1005, %v1484
        %v1487 = vld [vmem:[%s443] sm:$0x3]
        %v1489 = vlaneseq
        %v1490 = vshrl.u32 %v1489, 7
        %v1491 = vsub.s32 0, %v1490
        %v1492 = vrot.slane %v1487, %v1491
        %v1493 = vlaneseq
        %v1494 = vshrl.u32 %v1493, 7
        %v1495 = vsub.s32 1, %v1494
        %v1496 = vrot.slane %v1487, %v1495
        %v1499 = vadd.f32 %v1485, %v1492
        %v1500 = vadd.f32 %v1486, %v1496
        %v1503 = vcombine.low %v1499, %v1500
        %v1505 = vunpack.c.l.s4 1983009808
        %v1506 = vunpack.c.0.s8 %v1505
        %v1507 = vlaneseq
        %v1508 = vshrl.u32 %v1507, 7
        %v1509 = vsub.s32 %v1506, %v1508
        %v1510 = vrot.slane %v1503, %v1509
        %1512 = vst [vmem:[%s435] sm:$0xf] %v1510
        %s1513 = sand.u32 %s208, 1
        %s1514 = scalar_lea.sflag [#allocation4], %s1513
        %s1515 = sand.u32 %s208, 1
        %s1516 = smul.addr %s1515, 4
        %s1517 = scalar_lea.vmem [#allocation11], %s1516
        // Predicated region
        $region69: #{tpu_custom_call.1} parent=47 // pred_check
          %p1518 = pneg %p218
        $region70: #{tpu_custom_call.1} parent=47 // pred_check_branch
          %1520 = sbr.rel (%p1518) target = $region72
        $region71: #{tpu_custom_call.1} parent=47 // pred_region
          %s1521 = smul.u32 2, %s28
          %s1523 = ssub.s32 64, 64
          %1524 = vsyncadd %s1514, %s1523
          %s1525 = smul.addr %s1521, 32
          %s1526 = scalar_lea.hbm %s7, %s1525
          %s1528 = sshll.u32 %s1517, 4
          %s1529 = int_to_ptr.vmem [resolvable:$true] %s1528
          %1531 = dma.vmem_to_hbm [thread:$0]  %s1529, 64, %s1526, %s1514
        $region72: #{tpu_custom_call.1} parent=47 // pred_fallthru
          _
      $region48: #{tpu_custom_call.1} parent=5 // pred_fallthru
        _
      %p1532 = scmp.le.s32.totalorder 2, %s23
      // Predicated region
      $region73: #{tpu_custom_call.1} parent=5 // pred_check
        %p1533 = pneg %p1532
      $region74: #{tpu_custom_call.1} parent=5 // pred_check_branch
        %1535 = sbr.rel (%p1533) target = $region76
      $region75: #{tpu_custom_call.1} parent=5 // pred_region
        %s1536 = ssub.s32 %s23, 2
        // Predicated region
        $region77: #{tpu_custom_call.1} parent=75 // pred_check
          %p1537 = pneg %p224
        $region78: #{tpu_custom_call.1} parent=75 // pred_check_branch
          %1539 = sbr.rel (%p1537) target = $region80
        $region79: #{tpu_custom_call.1} parent=75 // pred_region
          %s1540 = sand.u32 %s209, 1
          %s1541 = scalar_lea.sflag [#allocation4], %s1540
          %s1542 = sand.u32 %s209, 1
          %s1543 = smul.addr %s1542, 4
          %s1544 = scalar_lea.vmem [#allocation11], %s1543
          %1545 = dma.done %s1541, 64
        $region80: #{tpu_custom_call.1} parent=75 // pred_fallthru
          _
      $region76: #{tpu_custom_call.1} parent=5 // pred_fallthru
        _
    $region6: #{tpu_custom_call.1} parent=1 // loop_footer
      %s27 = sadd.s32 1, %s23
    $region7: #{tpu_custom_call.1} parent=1 // loop_footer_branch
      %22 = sbr.rel target = $region3
    $region8: #{tpu_custom_call.1} parent=1 // loop_exit
      _
    %1546 = vsyncpa [#allocation3], 1
    %s1547 = scalar_lea.sflag [#allocation3], 1
    %1548 = vsyncpa %s1547, 1
    %1549 = vsyncpa [#allocation6], 1
    %s1550 = scalar_lea.sflag [#allocation6], 1
    %1551 = vsyncpa %s1550, 1
    %1552 = vsyncpa [#allocation9], 1
    %s1553 = scalar_lea.sflag [#allocation9], 1
    %1554 = vsyncpa %s1553, 1
    %1555 = vsyncpa [#allocation4], 1
    %s1556 = scalar_lea.sflag [#allocation4], 1
    %1557 = vsyncpa %s1556, 1

</llo_original>
